<compile_context>
chip_gen: v6e
topology: v6e:2x2x1
jax: 0.10.0
libtpu: 0.0.40
codegen_flags: <defaults>
</compile_context>

<pallas_src>
import jax
import jax.numpy as jnp
from jax import lax
from jax.experimental import pallas as pl
from jax.experimental.pallas import tpu as pltpu


_HI = lax.Precision.HIGHEST


# ----------------------------------------------------------------------------- kernel
def _make_kernel(offs, T, N, HG, HE, HD, FS, BT):
    NHG = N * HG

    def kernel(x_ref, dec0_ref, slab_ref, out_ref):
        # Static row/col slices into the packed weight slab (zero-cost views).
        def w(name):
            r0, r, c = offs[name]
            return slab_ref[pl.ds(r0, r), pl.ds(0, c)]

        def mm(a, b):
            return jnp.dot(a, b, preferred_element_type=jnp.float32)

        def gru_combine(gx, gh, h, hdim):
            # gx / gh already include the input / hidden biases.  Gate order r, z, n.
            r = jax.nn.sigmoid(gx[:, :hdim] + gh[:, :hdim])
            z = jax.nn.sigmoid(gx[:, hdim:2 * hdim] + gh[:, hdim:2 * hdim])
            n = jnp.tanh(gx[:, 2 * hdim:3 * hdim] + r * gh[:, 2 * hdim:3 * hdim])
            return (1.0 - z) * n + z * h

        # ------ encoder: folded GCN + GRU input projection, batched over all T*BT rows
        pre_e = mm(x_ref[...], w("wenc")) + w("bge")          # [T*BT, N*HG]
        emb = jnp.maximum(pre_e, 0.0)                          # relu(GCN)
        gx_all = mm(emb, w("wihe")) + w("bie")                 # [T*BT, 3*HE], stays a value

        whhe = w("whhe")
        bhe = w("bhe")

        # Fully unrolled recurrence with STATIC slices of gx_all (tiny trip count;
        # no VMEM scratch / dynamic-slice round trip on the critical path).
        h = jnp.zeros((BT, HE), jnp.float32)
        for t in range(T):
            gx_t = gx_all[t * BT:(t + 1) * BT, :]              # [BT, 3*HE]
            gh_e = mm(h, whhe) + bhe
            h = gru_combine(gx_t, gh_e, h, HE)

        # ------ decoder: 2 matmuls / step via fused weight  wfd = [wfcd | whhd | wfc]
        wihd = w("wihd")
        bid = w("bid")
        wfd = w("wfd")                                         # [HD, N*HG + 3*HD + N]
        bhd = w("bhd")
        bfc = w("bfc")
        bpre = w("bpre")                                       # bfc @ wdec + bgd

        gh = mm(h, wfd[:, NHG:NHG + 3 * HD]) + bhd             # h_enc @ whhd + bhd
        pre = mm(dec0_ref[...], w("wdec")) + w("bgd")          # dec0 @ kron(A^T, wgd) + bgd

        # TODO(synk): teacher forcing (targets + random.random() < ratio) is a host-side
        # stochastic branch; only the autoregressive inference path is implemented.
        outs = []
        for t in range(FS):                                    # fully unrolled
            e = jnp.maximum(pre, 0.0)                          # relu(decoder GCN)
            gx = mm(e, wihd) + bid                             # [BT, 3*HD]
            h = gru_combine(gx, gh, h, HD)
            fused = mm(h, wfd)                                 # [BT, N*HG + 3*HD + N]
            pre = fused[:, :NHG] + bpre                        # next step's GCN pre (fc folded in)
            gh = fused[:, NHG:NHG + 3 * HD] + bhd              # next step's h @ whhd + bhd
            out_t = fused[:, NHG + 3 * HD:] + bfc              # fc(h): this step's forecast
            outs.append(out_t)

        out_ref[...] = jnp.stack(outs, axis=0)                 # single [FS, BT, N] store

    return kernel


# ----------------------------------------------------------------------------- helpers
def gcn_norm_dense(edge_index, num_nodes):
    """Dense PyG-style GCN norm: returns M with  out = M @ (X @ W).

    Note: degree is the in-degree of the target nodes incl. self-loops
    (PyG default source_to_target flow); symmetric for undirected graphs."""
    src, dst = edge_index[0], edge_index[1]
    a = jnp.zeros((num_nodes, num_nodes), jnp.float32).at[src, dst].add(1.0)
    a = a + jnp.eye(num_nodes, dtype=jnp.float32)
    deg = jnp.sum(a, axis=0)
    dinv = lax.rsqrt(deg)
    return (dinv[:, None] * a * dinv[None, :]).T


def _pack_slab(entries):
    """Pack (name, 2-D f32 array) pairs into one lane-aligned resident VMEM slab.

    Every segment starts on an 8-row (sublane-tile) boundary and column 0, so the
    kernel can slice it with static, aligned offsets at zero runtime cost; the whole
    weight set then needs a single DMA instead of one per tensor."""
    width = max(int(a.shape[1]) for _, a in entries)
    width = ((width + 127) // 128) * 128
    segs, offs, r0 = [], {}, 0
    for name, a in entries:
        a = jnp.asarray(a, jnp.float32)
        r, c = int(a.shape[0]), int(a.shape[1])
        rp = ((r + 7) // 8) * 8
        seg = jnp.zeros((rp, width), jnp.float32).at[:r, :c].set(a)
        segs.append(seg)
        offs[name] = (r0, r, c)
        r0 += rp
    return jnp.concatenate(segs, axis=0), offs


def _num_batch_programs(B):
    """v7x has 2 TensorCores -> split the batch across 2 row-stacked programs;
    v5e/v6e have 1 TensorCore -> one fat program with all B rows stacked."""
    try:
        kind = jax.devices()[0].device_kind.lower()
    except Exception:
        kind = ""
    if (("v7" in kind) or ("7x" in kind)) and B >= 2 and B % 2 == 0:
        return 2
    return 1


# ----------------------------------------------------------------------------- wrapper
def grn_seq2seq_forward(x, dec0, edge_index, params, targets=None,
                        teacher_forcing_ratio=0.5):
    # Only the autoregressive (targets=None) decoder path is implemented.
    assert targets is None, "teacher forcing is not supported in the fused kernel"

    B, T, N, F = x.shape
    FS = params["forecast_steps"]
    HG = params["wge"].shape[1]
    HE = params["whhe"].shape[0]
    HD = params["whhd"].shape[0]
    assert HE == HD, "encoder hidden is handed to the decoder GRUCell directly"
    NHG = N * HG

    A = gcn_norm_dense(edge_index, N)                         # [N, N], applied from the left

    # Fold the normalized adjacency into the GCN weights (Kronecker trick):
    #   (x_flat @ kron(A^T, W))[(n,h)] == (A @ (x @ W))[n, h]
    # with node-major flattening, matching how wihe/wihd consume the flattened GCN output.
    wge = params["wge"].astype(jnp.float32)
    wgd = params["wgd"].astype(jnp.float32)
    wenc = jnp.kron(A.T, wge)                                 # [N*F, N*HG]
    wdec = jnp.kron(A.T, wgd)                                 # [N,   N*HG]
    bge_t = jnp.tile(params["bge"].astype(jnp.float32), (1, N))   # [1, N*HG]
    bgd_t = jnp.tile(params["bgd"].astype(jnp.float32), (1, N))   # [1, N*HG]

    # Fold the fc head into the *next* step's decoder GCN:
    #   pre_{t+1} = out_t @ wdec + bgd = h_t @ (wfc @ wdec) + (bfc @ wdec + bgd)
    wfc = params["wfc"].astype(jnp.float32)
    bfc = params["bfc"].astype(jnp.float32)
    wfcd = jnp.dot(wfc, wdec, precision=_HI)                  # [HD, N*HG]
    bpre = jnp.dot(bfc, wdec, precision=_HI) + bgd_t          # [1, N*HG]
    # Fused per-step decoder weight: h @ wfd -> [pre_{t+1} | gh_{t+1} | out_t]
    wfd = jnp.concatenate([wfcd, params["whhd"].astype(jnp.float32), wfc], axis=1)

    slab, offs = _pack_slab([
        ("wenc", wenc), ("bge", bge_t),
        ("wihe", params["wihe"]), ("whhe", params["whhe"]),
        ("bie", params["bie"]), ("bhe", params["bhe"]),
        ("wdec", wdec), ("bgd", bgd_t),
        ("wihd", params["wihd"]), ("bid", params["bid"]),
        ("wfd", wfd), ("bhd", params["bhd"]),
        ("bfc", bfc), ("bpre", bpre),
    ])

    n_progs = _num_batch_programs(B)
    BT = B // n_progs

    # Rows ordered (time, batch-within-tile): every time step is a contiguous
    # row block, so the recurrence slices gx_all with static contiguous slices.
    x_rows = (x.astype(jnp.float32)
              .reshape(n_progs, BT, T, N * F)
              .transpose(0, 2, 1, 3)
              .reshape(n_progs, T * BT, N * F))
    dec0_rows = dec0[..., 0].astype(jnp.float32).reshape(n_progs, BT, N)

    kernel = _make_kernel(offs, T, N, HG, HE, HD, FS, BT)
    out = pl.pallas_call(
        kernel,
        out_shape=jax.ShapeDtypeStruct((n_progs, FS, BT, N), jnp.float32),
        grid_spec=pltpu.PrefetchScalarGridSpec(
            num_scalar_prefetch=0,
            grid=(n_progs,),
            in_specs=[
                pl.BlockSpec((None, T * BT, N * F), lambda i: (i, 0, 0)),   # batch-tile of x
                pl.BlockSpec((None, BT, N), lambda i: (i, 0, 0)),           # decoder init input
                pl.BlockSpec(slab.shape, lambda i: (0, 0)),                 # resident weight slab
            ],
            out_specs=pl.BlockSpec((None, FS, BT, N), lambda i: (i, 0, 0, 0))),
        compiler_params=pltpu.CompilerParams(
            dimension_semantics=("parallel",)),
    )(x_rows, dec0_rows, slab)

    return out.transpose(0, 2, 1, 3).reshape(B, FS, N)        # PyTorch layout [B, FS, N]


# ----------------------------------------------------------------------------- pure-JAX reference
def reference_forward(x, dec0, edge_index, params):
    B, T, N, F = x.shape
    FS = params["forecast_steps"]
    HG = params["wge"].shape[1]
    HE = params["whhe"].shape[0]
    HD = params["whhd"].shape[0]
    A = gcn_norm_dense(edge_index, N)

    def mm(a, b):
        return jnp.dot(a, b, precision=_HI)

    def gru(gx, h, whh, bi, bh, hdim):
        gx = gx + bi
        gh = mm(h, whh) + bh
        r = jax.nn.sigmoid(gx[:, :hdim] + gh[:, :hdim])
        z = jax.nn.sigmoid(gx[:, hdim:2 * hdim] + gh[:, hdim:2 * hdim])
        n = jnp.tanh(gx[:, 2 * hdim:] + r * gh[:, 2 * hdim:])
        return (1.0 - z) * n + z * h

    h = jnp.zeros((B, HE), jnp.float32)
    for t in range(T):
        embs = jnp.stack(
            [jnp.maximum(mm(A, mm(x[b, t], params["wge"])) + params["bge"], 0.0)
             for b in range(B)], axis=0)
        gx = mm(embs.reshape(B, N * HG), params["wihe"])
        h = gru(gx, h, params["whhe"], params["bie"], params["bhe"], HE)

    inp = dec0
    outs = []
    for _ in range(FS):
        embs = jnp.stack(
            [jnp.maximum(mm(A, mm(inp[b], params["wgd"])) + params["bgd"], 0.0)
             for b in range(B)], axis=0)
        gx = mm(embs.reshape(B, N * HG), params["wihd"])
        h = gru(gx, h, params["whhd"], params["bid"], params["bhd"], HD)
        out = mm(h, params["wfc"]) + params["bfc"]
        outs.append(out)
        inp = out[:, :, None]
    return jnp.stack(outs, axis=1)


# ----------------------------------------------------------------------------- main
if __name__ == "__main__":
    B, T, N, F = 2, 8, 8, 4          # batch, seq len, num_nodes, encoder_input_dim
    HG, HE, HD, FS = 16, 32, 32, 4   # gcn_hidden, enc_gru_hidden, dec_gru_hidden, forecast_steps

    key = jax.random.PRNGKey(0)
    ks = jax.random.split(key, 20)

    def init(k, shape, fan):
        return jax.random.uniform(k, shape, jnp.float32, -1.0, 1.0) / jnp.sqrt(float(fan))

    params = {
        "forecast_steps": FS,
        # encoder GCNConv
        "wge": init(ks[0], (F, HG), F), "bge": init(ks[1], (1, HG), HG),
        # encoder GRU (weights stored transposed: [in, 3H] / [H, 3H]; gate order r,z,n)
        "wihe": init(ks[2], (N * HG, 3 * HE), N * HG), "whhe": init(ks[3], (HE, 3 * HE), HE),
        "bie": init(ks[4], (1, 3 * HE), HE), "bhe": init(ks[5], (1, 3 * HE), HE),
        # decoder GCNConv (input dim 1)
        "wgd": init(ks[6], (1, HG), 1), "bgd": init(ks[7], (1, HG), HG),
        # decoder GRUCell
        "wihd": init(ks[8], (N * HG, 3 * HD), N * HG), "whhd": init(ks[9], (HD, 3 * HD), HD),
        "bid": init(ks[10], (1, 3 * HD), HD), "bhd": init(ks[11], (1, 3 * HD), HD),
        # fc head
        "wfc": init(ks[12], (HD, N), HD), "bfc": init(ks[13], (1, N), HD),
    }

    x = jax.random.normal(ks[14], (B, T, N, F), jnp.float32) * 0.5
    dec0 = jax.random.normal(ks[15], (B, N, 1), jnp.float32) * 0.5

    # undirected ring graph edge_index [2, 2N]
    idx = jnp.arange(N, dtype=jnp.int32)
    nxt = (idx + 1) % N
    edge_index = jnp.stack([jnp.concatenate([idx, nxt]), jnp.concatenate([nxt, idx])])

    out = grn_seq2seq_forward(x, dec0, edge_index, params)
    out = jax.block_until_ready(out)

    ref = reference_forward(x, dec0, edge_index, params)
    assert out.shape == (B, FS, N)
    # Tolerance tightened 10x vs. the previous version (1e-2 -> 1e-3): layout /
    # ordering bugs produce O(0.1+) errors, while the remaining mismatch is only
    # MXU f32 pass accumulation order + the adjacency/fc weight-fold reassociation.
    assert bool(jnp.allclose(out, ref, rtol=1e-3, atol=1e-3))
    print("KERNEL_OK")
</pallas_src>

<mosaic_0001>
module attributes {stable_mosaic.version = 11 : i64} {
  func.func @kernel(%arg0: i32, %arg1: memref<1x16x32xf32, #tpu.memory_space<vmem>>, %arg2: memref<1x2x8xf32, #tpu.memory_space<vmem>>, %arg3: memref<424x256xf32, #tpu.memory_space<vmem>>, %arg4: memref<1x4x2x8xf32, #tpu.memory_space<vmem>>) attributes {dimension_semantics = [#tpu.dimension_semantics<parallel>], iteration_bounds = array<i64: 1>, scalar_prefetch = 0 : i64, scratch_operands = 0 : i64, tpu.core_type = #tpu.core_type<tc>, window_params = [{transform_indices = @transform_0, window_bounds = array<i64: 1, 16, 32>}, {transform_indices = @transform_1, window_bounds = array<i64: 1, 2, 8>}, {pipeline_mode = #tpu.pipeline_mode<synchronous>, transform_indices = @transform_2, window_bounds = array<i64: 424, 256>}, {transform_indices = @transform_3, window_bounds = array<i64: 1, 4, 2, 8>}]} {
    %c0 = arith.constant 0 : index
    %c0_0 = arith.constant 0 : index
    %c0_1 = arith.constant 0 : index
    %0 = vector.load %arg1[%c0, %c0_0, %c0_1] : memref<1x16x32xf32, #tpu.memory_space<vmem>>, vector<1x16x32xf32>
    %1 = vector.shape_cast %0 : vector<1x16x32xf32> to vector<16x32xf32>
    %c0_2 = arith.constant 0 : index
    %c0_3 = arith.constant 0 : index
    %2 = vector.load %arg3[%c0_2, %c0_3] : memref<424x256xf32, #tpu.memory_space<vmem>>, vector<32x128xf32>
    %cst = arith.constant dense<0.000000e+00> : vector<16x128xf32>
    %3 = tpu.matmul %1, %2, %cst {dimension_numbers = #tpu.dot_dimension_numbers<[1], [0], [0], [1], [0, 0, 1, 1], [], []>} : vector<16x32xf32>, vector<32x128xf32>, vector<16x128xf32> -> vector<16x128xf32>
    %c32 = arith.constant 32 : index
    %c0_4 = arith.constant 0 : index
    %4 = vector.load %arg3[%c32, %c0_4] : memref<424x256xf32, #tpu.memory_space<vmem>>, vector<1x128xf32>
    %5 = vector.broadcast %4 : vector<1x128xf32> to vector<16x128xf32>
    %6 = arith.addf %3, %5 : vector<16x128xf32>
    %cst_5 = arith.constant 0.000000e+00 : f32
    %7 = vector.broadcast %cst_5 : f32 to vector<16x128xf32>
    %8 = arith.maximumf %6, %7 : vector<16x128xf32>
    %c40 = arith.constant 40 : index
    %c0_6 = arith.constant 0 : index
    %9 = vector.load %arg3[%c40, %c0_6] : memref<424x256xf32, #tpu.memory_space<vmem>>, vector<128x96xf32>
    %cst_7 = arith.constant dense<0.000000e+00> : vector<16x96xf32>
    %10 = tpu.matmul %8, %9, %cst_7 {dimension_numbers = #tpu.dot_dimension_numbers<[1], [0], [0], [1], [0, 0, 1, 1], [], []>} : vector<16x128xf32>, vector<128x96xf32>, vector<16x96xf32> -> vector<16x96xf32>
    %c200 = arith.constant 200 : index
    %c0_8 = arith.constant 0 : index
    %11 = vector.load %arg3[%c200, %c0_8] : memref<424x256xf32, #tpu.memory_space<vmem>>, vector<1x96xf32>
    %12 = vector.broadcast %11 : vector<1x96xf32> to vector<16x96xf32>
    %13 = arith.addf %10, %12 : vector<16x96xf32>
    %c168 = arith.constant 168 : index
    %c0_9 = arith.constant 0 : index
    %14 = vector.load %arg3[%c168, %c0_9] : memref<424x256xf32, #tpu.memory_space<vmem>>, vector<32x96xf32>
    %c208 = arith.constant 208 : index
    %c0_10 = arith.constant 0 : index
    %15 = vector.load %arg3[%c208, %c0_10] : memref<424x256xf32, #tpu.memory_space<vmem>>, vector<1x96xf32>
    %cst_11 = arith.constant 0.000000e+00 : f32
    %16 = vector.broadcast %cst_11 : f32 to vector<2x32xf32>
    %17 = vector.extract_strided_slice %13 {offsets = [0, 0], sizes = [2, 96], strides = [1, 1]} : vector<16x96xf32> to vector<2x96xf32>
    %cst_12 = arith.constant dense<0.000000e+00> : vector<2x96xf32>
    %18 = tpu.matmul %16, %14, %cst_12 {dimension_numbers = #tpu.dot_dimension_numbers<[1], [0], [0], [1], [0, 0, 1, 1], [], []>} : vector<2x32xf32>, vector<32x96xf32>, vector<2x96xf32> -> vector<2x96xf32>
    %19 = vector.broadcast %15 : vector<1x96xf32> to vector<2x96xf32>
    %20 = arith.addf %18, %19 : vector<2x96xf32>
    %21 = vector.extract_strided_slice %17 {offsets = [0, 0], sizes = [2, 32], strides = [1, 1]} : vector<2x96xf32> to vector<2x32xf32>
    %22 = vector.extract_strided_slice %20 {offsets = [0, 0], sizes = [2, 32], strides = [1, 1]} : vector<2x96xf32> to vector<2x32xf32>
    %23 = arith.addf %21, %22 : vector<2x32xf32>
    %24 = arith.negf %23 : vector<2x32xf32>
    %25 = math.exp %24 : vector<2x32xf32>
    %cst_13 = arith.constant 1.000000e+00 : f32
    %26 = vector.broadcast %cst_13 : f32 to vector<2x32xf32>
    %27 = arith.addf %26, %25 : vector<2x32xf32>
    %28 = arith.divf %26, %27 : vector<2x32xf32>
    %29 = vector.extract_strided_slice %17 {offsets = [0, 32], sizes = [2, 32], strides = [1, 1]} : vector<2x96xf32> to vector<2x32xf32>
    %30 = vector.extract_strided_slice %20 {offsets = [0, 32], sizes = [2, 32], strides = [1, 1]} : vector<2x96xf32> to vector<2x32xf32>
    %31 = arith.addf %29, %30 : vector<2x32xf32>
    %32 = arith.negf %31 : vector<2x32xf32>
    %33 = math.exp %32 : vector<2x32xf32>
    %cst_14 = arith.constant 1.000000e+00 : f32
    %34 = vector.broadcast %cst_14 : f32 to vector<2x32xf32>
    %35 = arith.addf %34, %33 : vector<2x32xf32>
    %36 = arith.divf %34, %35 : vector<2x32xf32>
    %37 = vector.extract_strided_slice %17 {offsets = [0, 64], sizes = [2, 32], strides = [1, 1]} : vector<2x96xf32> to vector<2x32xf32>
    %38 = vector.extract_strided_slice %20 {offsets = [0, 64], sizes = [2, 32], strides = [1, 1]} : vector<2x96xf32> to vector<2x32xf32>
    %39 = arith.mulf %28, %38 : vector<2x32xf32>
    %40 = arith.addf %37, %39 : vector<2x32xf32>
    %41 = math.tanh %40 : vector<2x32xf32>
    %cst_15 = arith.constant 1.000000e+00 : f32
    %42 = vector.broadcast %cst_15 : f32 to vector<2x32xf32>
    %43 = arith.subf %42, %36 : vector<2x32xf32>
    %44 = arith.mulf %43, %41 : vector<2x32xf32>
    %45 = arith.mulf %36, %16 : vector<2x32xf32>
    %46 = arith.addf %44, %45 : vector<2x32xf32>
    %47 = vector.extract_strided_slice %13 {offsets = [2, 0], sizes = [2, 96], strides = [1, 1]} : vector<16x96xf32> to vector<2x96xf32>
    %cst_16 = arith.constant dense<0.000000e+00> : vector<2x96xf32>
    %48 = tpu.matmul %46, %14, %cst_16 {dimension_numbers = #tpu.dot_dimension_numbers<[1], [0], [0], [1], [0, 0, 1, 1], [], []>} : vector<2x32xf32>, vector<32x96xf32>, vector<2x96xf32> -> vector<2x96xf32>
    %49 = vector.broadcast %15 : vector<1x96xf32> to vector<2x96xf32>
    %50 = arith.addf %48, %49 : vector<2x96xf32>
    %51 = vector.extract_strided_slice %47 {offsets = [0, 0], sizes = [2, 32], strides = [1, 1]} : vector<2x96xf32> to vector<2x32xf32>
    %52 = vector.extract_strided_slice %50 {offsets = [0, 0], sizes = [2, 32], strides = [1, 1]} : vector<2x96xf32> to vector<2x32xf32>
    %53 = arith.addf %51, %52 : vector<2x32xf32>
    %54 = arith.negf %53 : vector<2x32xf32>
    %55 = math.exp %54 : vector<2x32xf32>
    %cst_17 = arith.constant 1.000000e+00 : f32
    %56 = vector.broadcast %cst_17 : f32 to vector<2x32xf32>
    %57 = arith.addf %56, %55 : vector<2x32xf32>
    %58 = arith.divf %56, %57 : vector<2x32xf32>
    %59 = vector.extract_strided_slice %47 {offsets = [0, 32], sizes = [2, 32], strides = [1, 1]} : vector<2x96xf32> to vector<2x32xf32>
    %60 = vector.extract_strided_slice %50 {offsets = [0, 32], sizes = [2, 32], strides = [1, 1]} : vector<2x96xf32> to vector<2x32xf32>
    %61 = arith.addf %59, %60 : vector<2x32xf32>
    %62 = arith.negf %61 : vector<2x32xf32>
    %63 = math.exp %62 : vector<2x32xf32>
    %cst_18 = arith.constant 1.000000e+00 : f32
    %64 = vector.broadcast %cst_18 : f32 to vector<2x32xf32>
    %65 = arith.addf %64, %63 : vector<2x32xf32>
    %66 = arith.divf %64, %65 : vector<2x32xf32>
    %67 = vector.extract_strided_slice %47 {offsets = [0, 64], sizes = [2, 32], strides = [1, 1]} : vector<2x96xf32> to vector<2x32xf32>
    %68 = vector.extract_strided_slice %50 {offsets = [0, 64], sizes = [2, 32], strides = [1, 1]} : vector<2x96xf32> to vector<2x32xf32>
    %69 = arith.mulf %58, %68 : vector<2x32xf32>
    %70 = arith.addf %67, %69 : vector<2x32xf32>
    %71 = math.tanh %70 : vector<2x32xf32>
    %cst_19 = arith.constant 1.000000e+00 : f32
    %72 = vector.broadcast %cst_19 : f32 to vector<2x32xf32>
    %73 = arith.subf %72, %66 : vector<2x32xf32>
    %74 = arith.mulf %73, %71 : vector<2x32xf32>
    %75 = arith.mulf %66, %46 : vector<2x32xf32>
    %76 = arith.addf %74, %75 : vector<2x32xf32>
    %77 = vector.extract_strided_slice %13 {offsets = [4, 0], sizes = [2, 96], strides = [1, 1]} : vector<16x96xf32> to vector<2x96xf32>
    %cst_20 = arith.constant dense<0.000000e+00> : vector<2x96xf32>
    %78 = tpu.matmul %76, %14, %cst_20 {dimension_numbers = #tpu.dot_dimension_numbers<[1], [0], [0], [1], [0, 0, 1, 1], [], []>} : vector<2x32xf32>, vector<32x96xf32>, vector<2x96xf32> -> vector<2x96xf32>
    %79 = vector.broadcast %15 : vector<1x96xf32> to vector<2x96xf32>
    %80 = arith.addf %78, %79 : vector<2x96xf32>
    %81 = vector.extract_strided_slice %77 {offsets = [0, 0], sizes = [2, 32], strides = [1, 1]} : vector<2x96xf32> to vector<2x32xf32>
    %82 = vector.extract_strided_slice %80 {offsets = [0, 0], sizes = [2, 32], strides = [1, 1]} : vector<2x96xf32> to vector<2x32xf32>
    %83 = arith.addf %81, %82 : vector<2x32xf32>
    %84 = arith.negf %83 : vector<2x32xf32>
    %85 = math.exp %84 : vector<2x32xf32>
    %cst_21 = arith.constant 1.000000e+00 : f32
    %86 = vector.broadcast %cst_21 : f32 to vector<2x32xf32>
    %87 = arith.addf %86, %85 : vector<2x32xf32>
    %88 = arith.divf %86, %87 : vector<2x32xf32>
    %89 = vector.extract_strided_slice %77 {offsets = [0, 32], sizes = [2, 32], strides = [1, 1]} : vector<2x96xf32> to vector<2x32xf32>
    %90 = vector.extract_strided_slice %80 {offsets = [0, 32], sizes = [2, 32], strides = [1, 1]} : vector<2x96xf32> to vector<2x32xf32>
    %91 = arith.addf %89, %90 : vector<2x32xf32>
    %92 = arith.negf %91 : vector<2x32xf32>
    %93 = math.exp %92 : vector<2x32xf32>
    %cst_22 = arith.constant 1.000000e+00 : f32
    %94 = vector.broadcast %cst_22 : f32 to vector<2x32xf32>
    %95 = arith.addf %94, %93 : vector<2x32xf32>
    %96 = arith.divf %94, %95 : vector<2x32xf32>
    %97 = vector.extract_strided_slice %77 {offsets = [0, 64], sizes = [2, 32], strides = [1, 1]} : vector<2x96xf32> to vector<2x32xf32>
    %98 = vector.extract_strided_slice %80 {offsets = [0, 64], sizes = [2, 32], strides = [1, 1]} : vector<2x96xf32> to vector<2x32xf32>
    %99 = arith.mulf %88, %98 : vector<2x32xf32>
    %100 = arith.addf %97, %99 : vector<2x32xf32>
    %101 = math.tanh %100 : vector<2x32xf32>
    %cst_23 = arith.constant 1.000000e+00 : f32
    %102 = vector.broadcast %cst_23 : f32 to vector<2x32xf32>
    %103 = arith.subf %102, %96 : vector<2x32xf32>
    %104 = arith.mulf %103, %101 : vector<2x32xf32>
    %105 = arith.mulf %96, %76 : vector<2x32xf32>
    %106 = arith.addf %104, %105 : vector<2x32xf32>
    %107 = vector.extract_strided_slice %13 {offsets = [6, 0], sizes = [2, 96], strides = [1, 1]} : vector<16x96xf32> to vector<2x96xf32>
    %cst_24 = arith.constant dense<0.000000e+00> : vector<2x96xf32>
    %108 = tpu.matmul %106, %14, %cst_24 {dimension_numbers = #tpu.dot_dimension_numbers<[1], [0], [0], [1], [0, 0, 1, 1], [], []>} : vector<2x32xf32>, vector<32x96xf32>, vector<2x96xf32> -> vector<2x96xf32>
    %109 = vector.broadcast %15 : vector<1x96xf32> to vector<2x96xf32>
    %110 = arith.addf %108, %109 : vector<2x96xf32>
    %111 = vector.extract_strided_slice %107 {offsets = [0, 0], sizes = [2, 32], strides = [1, 1]} : vector<2x96xf32> to vector<2x32xf32>
    %112 = vector.extract_strided_slice %110 {offsets = [0, 0], sizes = [2, 32], strides = [1, 1]} : vector<2x96xf32> to vector<2x32xf32>
    %113 = arith.addf %111, %112 : vector<2x32xf32>
    %114 = arith.negf %113 : vector<2x32xf32>
    %115 = math.exp %114 : vector<2x32xf32>
    %cst_25 = arith.constant 1.000000e+00 : f32
    %116 = vector.broadcast %cst_25 : f32 to vector<2x32xf32>
    %117 = arith.addf %116, %115 : vector<2x32xf32>
    %118 = arith.divf %116, %117 : vector<2x32xf32>
    %119 = vector.extract_strided_slice %107 {offsets = [0, 32], sizes = [2, 32], strides = [1, 1]} : vector<2x96xf32> to vector<2x32xf32>
    %120 = vector.extract_strided_slice %110 {offsets = [0, 32], sizes = [2, 32], strides = [1, 1]} : vector<2x96xf32> to vector<2x32xf32>
    %121 = arith.addf %119, %120 : vector<2x32xf32>
    %122 = arith.negf %121 : vector<2x32xf32>
    %123 = math.exp %122 : vector<2x32xf32>
    %cst_26 = arith.constant 1.000000e+00 : f32
    %124 = vector.broadcast %cst_26 : f32 to vector<2x32xf32>
    %125 = arith.addf %124, %123 : vector<2x32xf32>
    %126 = arith.divf %124, %125 : vector<2x32xf32>
    %127 = vector.extract_strided_slice %107 {offsets = [0, 64], sizes = [2, 32], strides = [1, 1]} : vector<2x96xf32> to vector<2x32xf32>
    %128 = vector.extract_strided_slice %110 {offsets = [0, 64], sizes = [2, 32], strides = [1, 1]} : vector<2x96xf32> to vector<2x32xf32>
    %129 = arith.mulf %118, %128 : vector<2x32xf32>
    %130 = arith.addf %127, %129 : vector<2x32xf32>
    %131 = math.tanh %130 : vector<2x32xf32>
    %cst_27 = arith.constant 1.000000e+00 : f32
    %132 = vector.broadcast %cst_27 : f32 to vector<2x32xf32>
    %133 = arith.subf %132, %126 : vector<2x32xf32>
    %134 = arith.mulf %133, %131 : vector<2x32xf32>
    %135 = arith.mulf %126, %106 : vector<2x32xf32>
    %136 = arith.addf %134, %135 : vector<2x32xf32>
    %137 = vector.extract_strided_slice %13 {offsets = [8, 0], sizes = [2, 96], strides = [1, 1]} : vector<16x96xf32> to vector<2x96xf32>
    %cst_28 = arith.constant dense<0.000000e+00> : vector<2x96xf32>
    %138 = tpu.matmul %136, %14, %cst_28 {dimension_numbers = #tpu.dot_dimension_numbers<[1], [0], [0], [1], [0, 0, 1, 1], [], []>} : vector<2x32xf32>, vector<32x96xf32>, vector<2x96xf32> -> vector<2x96xf32>
    %139 = vector.broadcast %15 : vector<1x96xf32> to vector<2x96xf32>
    %140 = arith.addf %138, %139 : vector<2x96xf32>
    %141 = vector.extract_strided_slice %137 {offsets = [0, 0], sizes = [2, 32], strides = [1, 1]} : vector<2x96xf32> to vector<2x32xf32>
    %142 = vector.extract_strided_slice %140 {offsets = [0, 0], sizes = [2, 32], strides = [1, 1]} : vector<2x96xf32> to vector<2x32xf32>
    %143 = arith.addf %141, %142 : vector<2x32xf32>
    %144 = arith.negf %143 : vector<2x32xf32>
    %145 = math.exp %144 : vector<2x32xf32>
    %cst_29 = arith.constant 1.000000e+00 : f32
    %146 = vector.broadcast %cst_29 : f32 to vector<2x32xf32>
    %147 = arith.addf %146, %145 : vector<2x32xf32>
    %148 = arith.divf %146, %147 : vector<2x32xf32>
    %149 = vector.extract_strided_slice %137 {offsets = [0, 32], sizes = [2, 32], strides = [1, 1]} : vector<2x96xf32> to vector<2x32xf32>
    %150 = vector.extract_strided_slice %140 {offsets = [0, 32], sizes = [2, 32], strides = [1, 1]} : vector<2x96xf32> to vector<2x32xf32>
    %151 = arith.addf %149, %150 : vector<2x32xf32>
    %152 = arith.negf %151 : vector<2x32xf32>
    %153 = math.exp %152 : vector<2x32xf32>
    %cst_30 = arith.constant 1.000000e+00 : f32
    %154 = vector.broadcast %cst_30 : f32 to vector<2x32xf32>
    %155 = arith.addf %154, %153 : vector<2x32xf32>
    %156 = arith.divf %154, %155 : vector<2x32xf32>
    %157 = vector.extract_strided_slice %137 {offsets = [0, 64], sizes = [2, 32], strides = [1, 1]} : vector<2x96xf32> to vector<2x32xf32>
    %158 = vector.extract_strided_slice %140 {offsets = [0, 64], sizes = [2, 32], strides = [1, 1]} : vector<2x96xf32> to vector<2x32xf32>
    %159 = arith.mulf %148, %158 : vector<2x32xf32>
    %160 = arith.addf %157, %159 : vector<2x32xf32>
    %161 = math.tanh %160 : vector<2x32xf32>
    %cst_31 = arith.constant 1.000000e+00 : f32
    %162 = vector.broadcast %cst_31 : f32 to vector<2x32xf32>
    %163 = arith.subf %162, %156 : vector<2x32xf32>
    %164 = arith.mulf %163, %161 : vector<2x32xf32>
    %165 = arith.mulf %156, %136 : vector<2x32xf32>
    %166 = arith.addf %164, %165 : vector<2x32xf32>
    %167 = vector.extract_strided_slice %13 {offsets = [10, 0], sizes = [2, 96], strides = [1, 1]} : vector<16x96xf32> to vector<2x96xf32>
    %cst_32 = arith.constant dense<0.000000e+00> : vector<2x96xf32>
    %168 = tpu.matmul %166, %14, %cst_32 {dimension_numbers = #tpu.dot_dimension_numbers<[1], [0], [0], [1], [0, 0, 1, 1], [], []>} : vector<2x32xf32>, vector<32x96xf32>, vector<2x96xf32> -> vector<2x96xf32>
    %169 = vector.broadcast %15 : vector<1x96xf32> to vector<2x96xf32>
    %170 = arith.addf %168, %169 : vector<2x96xf32>
    %171 = vector.extract_strided_slice %167 {offsets = [0, 0], sizes = [2, 32], strides = [1, 1]} : vector<2x96xf32> to vector<2x32xf32>
    %172 = vector.extract_strided_slice %170 {offsets = [0, 0], sizes = [2, 32], strides = [1, 1]} : vector<2x96xf32> to vector<2x32xf32>
    %173 = arith.addf %171, %172 : vector<2x32xf32>
    %174 = arith.negf %173 : vector<2x32xf32>
    %175 = math.exp %174 : vector<2x32xf32>
    %cst_33 = arith.constant 1.000000e+00 : f32
    %176 = vector.broadcast %cst_33 : f32 to vector<2x32xf32>
    %177 = arith.addf %176, %175 : vector<2x32xf32>
    %178 = arith.divf %176, %177 : vector<2x32xf32>
    %179 = vector.extract_strided_slice %167 {offsets = [0, 32], sizes = [2, 32], strides = [1, 1]} : vector<2x96xf32> to vector<2x32xf32>
    %180 = vector.extract_strided_slice %170 {offsets = [0, 32], sizes = [2, 32], strides = [1, 1]} : vector<2x96xf32> to vector<2x32xf32>
    %181 = arith.addf %179, %180 : vector<2x32xf32>
    %182 = arith.negf %181 : vector<2x32xf32>
    %183 = math.exp %182 : vector<2x32xf32>
    %cst_34 = arith.constant 1.000000e+00 : f32
    %184 = vector.broadcast %cst_34 : f32 to vector<2x32xf32>
    %185 = arith.addf %184, %183 : vector<2x32xf32>
    %186 = arith.divf %184, %185 : vector<2x32xf32>
    %187 = vector.extract_strided_slice %167 {offsets = [0, 64], sizes = [2, 32], strides = [1, 1]} : vector<2x96xf32> to vector<2x32xf32>
    %188 = vector.extract_strided_slice %170 {offsets = [0, 64], sizes = [2, 32], strides = [1, 1]} : vector<2x96xf32> to vector<2x32xf32>
    %189 = arith.mulf %178, %188 : vector<2x32xf32>
    %190 = arith.addf %187, %189 : vector<2x32xf32>
    %191 = math.tanh %190 : vector<2x32xf32>
    %cst_35 = arith.constant 1.000000e+00 : f32
    %192 = vector.broadcast %cst_35 : f32 to vector<2x32xf32>
    %193 = arith.subf %192, %186 : vector<2x32xf32>
    %194 = arith.mulf %193, %191 : vector<2x32xf32>
    %195 = arith.mulf %186, %166 : vector<2x32xf32>
    %196 = arith.addf %194, %195 : vector<2x32xf32>
    %197 = vector.extract_strided_slice %13 {offsets = [12, 0], sizes = [2, 96], strides = [1, 1]} : vector<16x96xf32> to vector<2x96xf32>
    %cst_36 = arith.constant dense<0.000000e+00> : vector<2x96xf32>
    %198 = tpu.matmul %196, %14, %cst_36 {dimension_numbers = #tpu.dot_dimension_numbers<[1], [0], [0], [1], [0, 0, 1, 1], [], []>} : vector<2x32xf32>, vector<32x96xf32>, vector<2x96xf32> -> vector<2x96xf32>
    %199 = vector.broadcast %15 : vector<1x96xf32> to vector<2x96xf32>
    %200 = arith.addf %198, %199 : vector<2x96xf32>
    %201 = vector.extract_strided_slice %197 {offsets = [0, 0], sizes = [2, 32], strides = [1, 1]} : vector<2x96xf32> to vector<2x32xf32>
    %202 = vector.extract_strided_slice %200 {offsets = [0, 0], sizes = [2, 32], strides = [1, 1]} : vector<2x96xf32> to vector<2x32xf32>
    %203 = arith.addf %201, %202 : vector<2x32xf32>
    %204 = arith.negf %203 : vector<2x32xf32>
    %205 = math.exp %204 : vector<2x32xf32>
    %cst_37 = arith.constant 1.000000e+00 : f32
    %206 = vector.broadcast %cst_37 : f32 to vector<2x32xf32>
    %207 = arith.addf %206, %205 : vector<2x32xf32>
    %208 = arith.divf %206, %207 : vector<2x32xf32>
    %209 = vector.extract_strided_slice %197 {offsets = [0, 32], sizes = [2, 32], strides = [1, 1]} : vector<2x96xf32> to vector<2x32xf32>
    %210 = vector.extract_strided_slice %200 {offsets = [0, 32], sizes = [2, 32], strides = [1, 1]} : vector<2x96xf32> to vector<2x32xf32>
    %211 = arith.addf %209, %210 : vector<2x32xf32>
    %212 = arith.negf %211 : vector<2x32xf32>
    %213 = math.exp %212 : vector<2x32xf32>
    %cst_38 = arith.constant 1.000000e+00 : f32
    %214 = vector.broadcast %cst_38 : f32 to vector<2x32xf32>
    %215 = arith.addf %214, %213 : vector<2x32xf32>
    %216 = arith.divf %214, %215 : vector<2x32xf32>
    %217 = vector.extract_strided_slice %197 {offsets = [0, 64], sizes = [2, 32], strides = [1, 1]} : vector<2x96xf32> to vector<2x32xf32>
    %218 = vector.extract_strided_slice %200 {offsets = [0, 64], sizes = [2, 32], strides = [1, 1]} : vector<2x96xf32> to vector<2x32xf32>
    %219 = arith.mulf %208, %218 : vector<2x32xf32>
    %220 = arith.addf %217, %219 : vector<2x32xf32>
    %221 = math.tanh %220 : vector<2x32xf32>
    %cst_39 = arith.constant 1.000000e+00 : f32
    %222 = vector.broadcast %cst_39 : f32 to vector<2x32xf32>
    %223 = arith.subf %222, %216 : vector<2x32xf32>
    %224 = arith.mulf %223, %221 : vector<2x32xf32>
    %225 = arith.mulf %216, %196 : vector<2x32xf32>
    %226 = arith.addf %224, %225 : vector<2x32xf32>
    %227 = vector.extract_strided_slice %13 {offsets = [14, 0], sizes = [2, 96], strides = [1, 1]} : vector<16x96xf32> to vector<2x96xf32>
    %cst_40 = arith.constant dense<0.000000e+00> : vector<2x96xf32>
    %228 = tpu.matmul %226, %14, %cst_40 {dimension_numbers = #tpu.dot_dimension_numbers<[1], [0], [0], [1], [0, 0, 1, 1], [], []>} : vector<2x32xf32>, vector<32x96xf32>, vector<2x96xf32> -> vector<2x96xf32>
    %229 = vector.broadcast %15 : vector<1x96xf32> to vector<2x96xf32>
    %230 = arith.addf %228, %229 : vector<2x96xf32>
    %231 = vector.extract_strided_slice %227 {offsets = [0, 0], sizes = [2, 32], strides = [1, 1]} : vector<2x96xf32> to vector<2x32xf32>
    %232 = vector.extract_strided_slice %230 {offsets = [0, 0], sizes = [2, 32], strides = [1, 1]} : vector<2x96xf32> to vector<2x32xf32>
    %233 = arith.addf %231, %232 : vector<2x32xf32>
    %234 = arith.negf %233 : vector<2x32xf32>
    %235 = math.exp %234 : vector<2x32xf32>
    %cst_41 = arith.constant 1.000000e+00 : f32
    %236 = vector.broadcast %cst_41 : f32 to vector<2x32xf32>
    %237 = arith.addf %236, %235 : vector<2x32xf32>
    %238 = arith.divf %236, %237 : vector<2x32xf32>
    %239 = vector.extract_strided_slice %227 {offsets = [0, 32], sizes = [2, 32], strides = [1, 1]} : vector<2x96xf32> to vector<2x32xf32>
    %240 = vector.extract_strided_slice %230 {offsets = [0, 32], sizes = [2, 32], strides = [1, 1]} : vector<2x96xf32> to vector<2x32xf32>
    %241 = arith.addf %239, %240 : vector<2x32xf32>
    %242 = arith.negf %241 : vector<2x32xf32>
    %243 = math.exp %242 : vector<2x32xf32>
    %cst_42 = arith.constant 1.000000e+00 : f32
    %244 = vector.broadcast %cst_42 : f32 to vector<2x32xf32>
    %245 = arith.addf %244, %243 : vector<2x32xf32>
    %246 = arith.divf %244, %245 : vector<2x32xf32>
    %247 = vector.extract_strided_slice %227 {offsets = [0, 64], sizes = [2, 32], strides = [1, 1]} : vector<2x96xf32> to vector<2x32xf32>
    %248 = vector.extract_strided_slice %230 {offsets = [0, 64], sizes = [2, 32], strides = [1, 1]} : vector<2x96xf32> to vector<2x32xf32>
    %249 = arith.mulf %238, %248 : vector<2x32xf32>
    %250 = arith.addf %247, %249 : vector<2x32xf32>
    %251 = math.tanh %250 : vector<2x32xf32>
    %cst_43 = arith.constant 1.000000e+00 : f32
    %252 = vector.broadcast %cst_43 : f32 to vector<2x32xf32>
    %253 = arith.subf %252, %246 : vector<2x32xf32>
    %254 = arith.mulf %253, %251 : vector<2x32xf32>
    %255 = arith.mulf %246, %226 : vector<2x32xf32>
    %256 = arith.addf %254, %255 : vector<2x32xf32>
    %c232 = arith.constant 232 : index
    %c0_44 = arith.constant 0 : index
    %257 = vector.load %arg3[%c232, %c0_44] : memref<424x256xf32, #tpu.memory_space<vmem>>, vector<128x96xf32>
    %c360 = arith.constant 360 : index
    %c0_45 = arith.constant 0 : index
    %258 = vector.load %arg3[%c360, %c0_45] : memref<424x256xf32, #tpu.memory_space<vmem>>, vector<1x96xf32>
    %c368 = arith.constant 368 : index
    %c0_46 = arith.constant 0 : index
    %259 = vector.load %arg3[%c368, %c0_46] : memref<424x256xf32, #tpu.memory_space<vmem>>, vector<32x232xf32>
    %c400 = arith.constant 400 : index
    %c0_47 = arith.constant 0 : index
    %260 = vector.load %arg3[%c400, %c0_47] : memref<424x256xf32, #tpu.memory_space<vmem>>, vector<1x96xf32>
    %c408 = arith.constant 408 : index
    %c0_48 = arith.constant 0 : index
    %261 = vector.load %arg3[%c408, %c0_48] : memref<424x256xf32, #tpu.memory_space<vmem>>, vector<1x8xf32>
    %c416 = arith.constant 416 : index
    %c0_49 = arith.constant 0 : index
    %262 = vector.load %arg3[%c416, %c0_49] : memref<424x256xf32, #tpu.memory_space<vmem>>, vector<1x128xf32>
    %263 = vector.extract_strided_slice %259 {offsets = [0, 128], sizes = [32, 96], strides = [1, 1]} : vector<32x232xf32> to vector<32x96xf32>
    %cst_50 = arith.constant dense<0.000000e+00> : vector<2x96xf32>
    %264 = tpu.matmul %256, %263, %cst_50 {dimension_numbers = #tpu.dot_dimension_numbers<[1], [0], [0], [1], [0, 0, 1, 1], [], []>} : vector<2x32xf32>, vector<32x96xf32>, vector<2x96xf32> -> vector<2x96xf32>
    %265 = vector.broadcast %260 : vector<1x96xf32> to vector<2x96xf32>
    %266 = arith.addf %264, %265 : vector<2x96xf32>
    %c0_51 = arith.constant 0 : index
    %c0_52 = arith.constant 0 : index
    %c0_53 = arith.constant 0 : index
    %267 = vector.load %arg2[%c0_51, %c0_52, %c0_53] : memref<1x2x8xf32, #tpu.memory_space<vmem>>, vector<1x2x8xf32>
    %268 = vector.shape_cast %267 : vector<1x2x8xf32> to vector<2x8xf32>
    %c216 = arith.constant 216 : index
    %c0_54 = arith.constant 0 : index
    %269 = vector.load %arg3[%c216, %c0_54] : memref<424x256xf32, #tpu.memory_space<vmem>>, vector<8x128xf32>
    %cst_55 = arith.constant dense<0.000000e+00> : vector<2x128xf32>
    %270 = tpu.matmul %268, %269, %cst_55 {dimension_numbers = #tpu.dot_dimension_numbers<[1], [0], [0], [1], [0, 0, 1, 1], [], []>} : vector<2x8xf32>, vector<8x128xf32>, vector<2x128xf32> -> vector<2x128xf32>
    %c224 = arith.constant 224 : index
    %c0_56 = arith.constant 0 : index
    %271 = vector.load %arg3[%c224, %c0_56] : memref<424x256xf32, #tpu.memory_space<vmem>>, vector<1x128xf32>
    %272 = vector.broadcast %271 : vector<1x128xf32> to vector<2x128xf32>
    %273 = arith.addf %270, %272 : vector<2x128xf32>
    %cst_57 = arith.constant 0.000000e+00 : f32
    %274 = vector.broadcast %cst_57 : f32 to vector<2x128xf32>
    %275 = arith.maximumf %273, %274 : vector<2x128xf32>
    %cst_58 = arith.constant dense<0.000000e+00> : vector<2x96xf32>
    %276 = tpu.matmul %275, %257, %cst_58 {dimension_numbers = #tpu.dot_dimension_numbers<[1], [0], [0], [1], [0, 0, 1, 1], [], []>} : vector<2x128xf32>, vector<128x96xf32>, vector<2x96xf32> -> vector<2x96xf32>
    %277 = vector.broadcast %258 : vector<1x96xf32> to vector<2x96xf32>
    %278 = arith.addf %276, %277 : vector<2x96xf32>
    %279 = vector.extract_strided_slice %278 {offsets = [0, 0], sizes = [2, 32], strides = [1, 1]} : vector<2x96xf32> to vector<2x32xf32>
    %280 = vector.extract_strided_slice %266 {offsets = [0, 0], sizes = [2, 32], strides = [1, 1]} : vector<2x96xf32> to vector<2x32xf32>
    %281 = arith.addf %279, %280 : vector<2x32xf32>
    %282 = arith.negf %281 : vector<2x32xf32>
    %283 = math.exp %282 : vector<2x32xf32>
    %cst_59 = arith.constant 1.000000e+00 : f32
    %284 = vector.broadcast %cst_59 : f32 to vector<2x32xf32>
    %285 = arith.addf %284, %283 : vector<2x32xf32>
    %286 = arith.divf %284, %285 : vector<2x32xf32>
    %287 = vector.extract_strided_slice %278 {offsets = [0, 32], sizes = [2, 32], strides = [1, 1]} : vector<2x96xf32> to vector<2x32xf32>
    %288 = vector.extract_strided_slice %266 {offsets = [0, 32], sizes = [2, 32], strides = [1, 1]} : vector<2x96xf32> to vector<2x32xf32>
    %289 = arith.addf %287, %288 : vector<2x32xf32>
    %290 = arith.negf %289 : vector<2x32xf32>
    %291 = math.exp %290 : vector<2x32xf32>
    %cst_60 = arith.constant 1.000000e+00 : f32
    %292 = vector.broadcast %cst_60 : f32 to vector<2x32xf32>
    %293 = arith.addf %292, %291 : vector<2x32xf32>
    %294 = arith.divf %292, %293 : vector<2x32xf32>
    %295 = vector.extract_strided_slice %278 {offsets = [0, 64], sizes = [2, 32], strides = [1, 1]} : vector<2x96xf32> to vector<2x32xf32>
    %296 = vector.extract_strided_slice %266 {offsets = [0, 64], sizes = [2, 32], strides = [1, 1]} : vector<2x96xf32> to vector<2x32xf32>
    %297 = arith.mulf %286, %296 : vector<2x32xf32>
    %298 = arith.addf %295, %297 : vector<2x32xf32>
    %299 = math.tanh %298 : vector<2x32xf32>
    %cst_61 = arith.constant 1.000000e+00 : f32
    %300 = vector.broadcast %cst_61 : f32 to vector<2x32xf32>
    %301 = arith.subf %300, %294 : vector<2x32xf32>
    %302 = arith.mulf %301, %299 : vector<2x32xf32>
    %303 = arith.mulf %294, %256 : vector<2x32xf32>
    %304 = arith.addf %302, %303 : vector<2x32xf32>
    %cst_62 = arith.constant dense<0.000000e+00> : vector<2x232xf32>
    %305 = tpu.matmul %304, %259, %cst_62 {dimension_numbers = #tpu.dot_dimension_numbers<[1], [0], [0], [1], [0, 0, 1, 1], [], []>} : vector<2x32xf32>, vector<32x232xf32>, vector<2x232xf32> -> vector<2x232xf32>
    %306 = vector.extract_strided_slice %305 {offsets = [0, 0], sizes = [2, 128], strides = [1, 1]} : vector<2x232xf32> to vector<2x128xf32>
    %307 = vector.broadcast %262 : vector<1x128xf32> to vector<2x128xf32>
    %308 = arith.addf %306, %307 : vector<2x128xf32>
    %309 = vector.extract_strided_slice %305 {offsets = [0, 128], sizes = [2, 96], strides = [1, 1]} : vector<2x232xf32> to vector<2x96xf32>
    %310 = vector.broadcast %260 : vector<1x96xf32> to vector<2x96xf32>
    %311 = arith.addf %309, %310 : vector<2x96xf32>
    %312 = vector.extract_strided_slice %305 {offsets = [0, 224], sizes = [2, 8], strides = [1, 1]} : vector<2x232xf32> to vector<2x8xf32>
    %313 = vector.broadcast %261 : vector<1x8xf32> to vector<2x8xf32>
    %314 = arith.addf %312, %313 : vector<2x8xf32>
    %cst_63 = arith.constant 0.000000e+00 : f32
    %315 = vector.broadcast %cst_63 : f32 to vector<2x128xf32>
    %316 = arith.maximumf %308, %315 : vector<2x128xf32>
    %cst_64 = arith.constant dense<0.000000e+00> : vector<2x96xf32>
    %317 = tpu.matmul %316, %257, %cst_64 {dimension_numbers = #tpu.dot_dimension_numbers<[1], [0], [0], [1], [0, 0, 1, 1], [], []>} : vector<2x128xf32>, vector<128x96xf32>, vector<2x96xf32> -> vector<2x96xf32>
    %318 = vector.broadcast %258 : vector<1x96xf32> to vector<2x96xf32>
    %319 = arith.addf %317, %318 : vector<2x96xf32>
    %320 = vector.extract_strided_slice %319 {offsets = [0, 0], sizes = [2, 32], strides = [1, 1]} : vector<2x96xf32> to vector<2x32xf32>
    %321 = vector.extract_strided_slice %311 {offsets = [0, 0], sizes = [2, 32], strides = [1, 1]} : vector<2x96xf32> to vector<2x32xf32>
    %322 = arith.addf %320, %321 : vector<2x32xf32>
    %323 = arith.negf %322 : vector<2x32xf32>
    %324 = math.exp %323 : vector<2x32xf32>
    %cst_65 = arith.constant 1.000000e+00 : f32
    %325 = vector.broadcast %cst_65 : f32 to vector<2x32xf32>
    %326 = arith.addf %325, %324 : vector<2x32xf32>
    %327 = arith.divf %325, %326 : vector<2x32xf32>
    %328 = vector.extract_strided_slice %319 {offsets = [0, 32], sizes = [2, 32], strides = [1, 1]} : vector<2x96xf32> to vector<2x32xf32>
    %329 = vector.extract_strided_slice %311 {offsets = [0, 32], sizes = [2, 32], strides = [1, 1]} : vector<2x96xf32> to vector<2x32xf32>
    %330 = arith.addf %328, %329 : vector<2x32xf32>
    %331 = arith.negf %330 : vector<2x32xf32>
    %332 = math.exp %331 : vector<2x32xf32>
    %cst_66 = arith.constant 1.000000e+00 : f32
    %333 = vector.broadcast %cst_66 : f32 to vector<2x32xf32>
    %334 = arith.addf %333, %332 : vector<2x32xf32>
    %335 = arith.divf %333, %334 : vector<2x32xf32>
    %336 = vector.extract_strided_slice %319 {offsets = [0, 64], sizes = [2, 32], strides = [1, 1]} : vector<2x96xf32> to vector<2x32xf32>
    %337 = vector.extract_strided_slice %311 {offsets = [0, 64], sizes = [2, 32], strides = [1, 1]} : vector<2x96xf32> to vector<2x32xf32>
    %338 = arith.mulf %327, %337 : vector<2x32xf32>
    %339 = arith.addf %336, %338 : vector<2x32xf32>
    %340 = math.tanh %339 : vector<2x32xf32>
    %cst_67 = arith.constant 1.000000e+00 : f32
    %341 = vector.broadcast %cst_67 : f32 to vector<2x32xf32>
    %342 = arith.subf %341, %335 : vector<2x32xf32>
    %343 = arith.mulf %342, %340 : vector<2x32xf32>
    %344 = arith.mulf %335, %304 : vector<2x32xf32>
    %345 = arith.addf %343, %344 : vector<2x32xf32>
    %cst_68 = arith.constant dense<0.000000e+00> : vector<2x232xf32>
    %346 = tpu.matmul %345, %259, %cst_68 {dimension_numbers = #tpu.dot_dimension_numbers<[1], [0], [0], [1], [0, 0, 1, 1], [], []>} : vector<2x32xf32>, vector<32x232xf32>, vector<2x232xf32> -> vector<2x232xf32>
    %347 = vector.extract_strided_slice %346 {offsets = [0, 0], sizes = [2, 128], strides = [1, 1]} : vector<2x232xf32> to vector<2x128xf32>
    %348 = vector.broadcast %262 : vector<1x128xf32> to vector<2x128xf32>
    %349 = arith.addf %347, %348 : vector<2x128xf32>
    %350 = vector.extract_strided_slice %346 {offsets = [0, 128], sizes = [2, 96], strides = [1, 1]} : vector<2x232xf32> to vector<2x96xf32>
    %351 = vector.broadcast %260 : vector<1x96xf32> to vector<2x96xf32>
    %352 = arith.addf %350, %351 : vector<2x96xf32>
    %353 = vector.extract_strided_slice %346 {offsets = [0, 224], sizes = [2, 8], strides = [1, 1]} : vector<2x232xf32> to vector<2x8xf32>
    %354 = vector.broadcast %261 : vector<1x8xf32> to vector<2x8xf32>
    %355 = arith.addf %353, %354 : vector<2x8xf32>
    %cst_69 = arith.constant 0.000000e+00 : f32
    %356 = vector.broadcast %cst_69 : f32 to vector<2x128xf32>
    %357 = arith.maximumf %349, %356 : vector<2x128xf32>
    %cst_70 = arith.constant dense<0.000000e+00> : vector<2x96xf32>
    %358 = tpu.matmul %357, %257, %cst_70 {dimension_numbers = #tpu.dot_dimension_numbers<[1], [0], [0], [1], [0, 0, 1, 1], [], []>} : vector<2x128xf32>, vector<128x96xf32>, vector<2x96xf32> -> vector<2x96xf32>
    %359 = vector.broadcast %258 : vector<1x96xf32> to vector<2x96xf32>
    %360 = arith.addf %358, %359 : vector<2x96xf32>
    %361 = vector.extract_strided_slice %360 {offsets = [0, 0], sizes = [2, 32], strides = [1, 1]} : vector<2x96xf32> to vector<2x32xf32>
    %362 = vector.extract_strided_slice %352 {offsets = [0, 0], sizes = [2, 32], strides = [1, 1]} : vector<2x96xf32> to vector<2x32xf32>
    %363 = arith.addf %361, %362 : vector<2x32xf32>
    %364 = arith.negf %363 : vector<2x32xf32>
    %365 = math.exp %364 : vector<2x32xf32>
    %cst_71 = arith.constant 1.000000e+00 : f32
    %366 = vector.broadcast %cst_71 : f32 to vector<2x32xf32>
    %367 = arith.addf %366, %365 : vector<2x32xf32>
    %368 = arith.divf %366, %367 : vector<2x32xf32>
    %369 = vector.extract_strided_slice %360 {offsets = [0, 32], sizes = [2, 32], strides = [1, 1]} : vector<2x96xf32> to vector<2x32xf32>
    %370 = vector.extract_strided_slice %352 {offsets = [0, 32], sizes = [2, 32], strides = [1, 1]} : vector<2x96xf32> to vector<2x32xf32>
    %371 = arith.addf %369, %370 : vector<2x32xf32>
    %372 = arith.negf %371 : vector<2x32xf32>
    %373 = math.exp %372 : vector<2x32xf32>
    %cst_72 = arith.constant 1.000000e+00 : f32
    %374 = vector.broadcast %cst_72 : f32 to vector<2x32xf32>
    %375 = arith.addf %374, %373 : vector<2x32xf32>
    %376 = arith.divf %374, %375 : vector<2x32xf32>
    %377 = vector.extract_strided_slice %360 {offsets = [0, 64], sizes = [2, 32], strides = [1, 1]} : vector<2x96xf32> to vector<2x32xf32>
    %378 = vector.extract_strided_slice %352 {offsets = [0, 64], sizes = [2, 32], strides = [1, 1]} : vector<2x96xf32> to vector<2x32xf32>
    %379 = arith.mulf %368, %378 : vector<2x32xf32>
    %380 = arith.addf %377, %379 : vector<2x32xf32>
    %381 = math.tanh %380 : vector<2x32xf32>
    %cst_73 = arith.constant 1.000000e+00 : f32
    %382 = vector.broadcast %cst_73 : f32 to vector<2x32xf32>
    %383 = arith.subf %382, %376 : vector<2x32xf32>
    %384 = arith.mulf %383, %381 : vector<2x32xf32>
    %385 = arith.mulf %376, %345 : vector<2x32xf32>
    %386 = arith.addf %384, %385 : vector<2x32xf32>
    %cst_74 = arith.constant dense<0.000000e+00> : vector<2x232xf32>
    %387 = tpu.matmul %386, %259, %cst_74 {dimension_numbers = #tpu.dot_dimension_numbers<[1], [0], [0], [1], [0, 0, 1, 1], [], []>} : vector<2x32xf32>, vector<32x232xf32>, vector<2x232xf32> -> vector<2x232xf32>
    %388 = vector.extract_strided_slice %387 {offsets = [0, 0], sizes = [2, 128], strides = [1, 1]} : vector<2x232xf32> to vector<2x128xf32>
    %389 = vector.broadcast %262 : vector<1x128xf32> to vector<2x128xf32>
    %390 = arith.addf %388, %389 : vector<2x128xf32>
    %391 = vector.extract_strided_slice %387 {offsets = [0, 128], sizes = [2, 96], strides = [1, 1]} : vector<2x232xf32> to vector<2x96xf32>
    %392 = vector.broadcast %260 : vector<1x96xf32> to vector<2x96xf32>
    %393 = arith.addf %391, %392 : vector<2x96xf32>
    %394 = vector.extract_strided_slice %387 {offsets = [0, 224], sizes = [2, 8], strides = [1, 1]} : vector<2x232xf32> to vector<2x8xf32>
    %395 = vector.broadcast %261 : vector<1x8xf32> to vector<2x8xf32>
    %396 = arith.addf %394, %395 : vector<2x8xf32>
    %cst_75 = arith.constant 0.000000e+00 : f32
    %397 = vector.broadcast %cst_75 : f32 to vector<2x128xf32>
    %398 = arith.maximumf %390, %397 : vector<2x128xf32>
    %cst_76 = arith.constant dense<0.000000e+00> : vector<2x96xf32>
    %399 = tpu.matmul %398, %257, %cst_76 {dimension_numbers = #tpu.dot_dimension_numbers<[1], [0], [0], [1], [0, 0, 1, 1], [], []>} : vector<2x128xf32>, vector<128x96xf32>, vector<2x96xf32> -> vector<2x96xf32>
    %400 = vector.broadcast %258 : vector<1x96xf32> to vector<2x96xf32>
    %401 = arith.addf %399, %400 : vector<2x96xf32>
    %402 = vector.extract_strided_slice %401 {offsets = [0, 0], sizes = [2, 32], strides = [1, 1]} : vector<2x96xf32> to vector<2x32xf32>
    %403 = vector.extract_strided_slice %393 {offsets = [0, 0], sizes = [2, 32], strides = [1, 1]} : vector<2x96xf32> to vector<2x32xf32>
    %404 = arith.addf %402, %403 : vector<2x32xf32>
    %405 = arith.negf %404 : vector<2x32xf32>
    %406 = math.exp %405 : vector<2x32xf32>
    %cst_77 = arith.constant 1.000000e+00 : f32
    %407 = vector.broadcast %cst_77 : f32 to vector<2x32xf32>
    %408 = arith.addf %407, %406 : vector<2x32xf32>
    %409 = arith.divf %407, %408 : vector<2x32xf32>
    %410 = vector.extract_strided_slice %401 {offsets = [0, 32], sizes = [2, 32], strides = [1, 1]} : vector<2x96xf32> to vector<2x32xf32>
    %411 = vector.extract_strided_slice %393 {offsets = [0, 32], sizes = [2, 32], strides = [1, 1]} : vector<2x96xf32> to vector<2x32xf32>
    %412 = arith.addf %410, %411 : vector<2x32xf32>
    %413 = arith.negf %412 : vector<2x32xf32>
    %414 = math.exp %413 : vector<2x32xf32>
    %cst_78 = arith.constant 1.000000e+00 : f32
    %415 = vector.broadcast %cst_78 : f32 to vector<2x32xf32>
    %416 = arith.addf %415, %414 : vector<2x32xf32>
    %417 = arith.divf %415, %416 : vector<2x32xf32>
    %418 = vector.extract_strided_slice %401 {offsets = [0, 64], sizes = [2, 32], strides = [1, 1]} : vector<2x96xf32> to vector<2x32xf32>
    %419 = vector.extract_strided_slice %393 {offsets = [0, 64], sizes = [2, 32], strides = [1, 1]} : vector<2x96xf32> to vector<2x32xf32>
    %420 = arith.mulf %409, %419 : vector<2x32xf32>
    %421 = arith.addf %418, %420 : vector<2x32xf32>
    %422 = math.tanh %421 : vector<2x32xf32>
    %cst_79 = arith.constant 1.000000e+00 : f32
    %423 = vector.broadcast %cst_79 : f32 to vector<2x32xf32>
    %424 = arith.subf %423, %417 : vector<2x32xf32>
    %425 = arith.mulf %424, %422 : vector<2x32xf32>
    %426 = arith.mulf %417, %386 : vector<2x32xf32>
    %427 = arith.addf %425, %426 : vector<2x32xf32>
    %cst_80 = arith.constant dense<0.000000e+00> : vector<2x232xf32>
    %428 = tpu.matmul %427, %259, %cst_80 {dimension_numbers = #tpu.dot_dimension_numbers<[1], [0], [0], [1], [0, 0, 1, 1], [], []>} : vector<2x32xf32>, vector<32x232xf32>, vector<2x232xf32> -> vector<2x232xf32>
    %429 = vector.extract_strided_slice %428 {offsets = [0, 224], sizes = [2, 8], strides = [1, 1]} : vector<2x232xf32> to vector<2x8xf32>
    %430 = vector.broadcast %261 : vector<1x8xf32> to vector<2x8xf32>
    %431 = arith.addf %429, %430 : vector<2x8xf32>
    %432 = vector.shape_cast %314 : vector<2x8xf32> to vector<1x2x8xf32>
    %433 = vector.shape_cast %355 : vector<2x8xf32> to vector<1x2x8xf32>
    %434 = vector.shape_cast %396 : vector<2x8xf32> to vector<1x2x8xf32>
    %435 = vector.shape_cast %431 : vector<2x8xf32> to vector<1x2x8xf32>
    %436 = tpu.concatenate %432, %433, %434, %435 in 0 : vector<1x2x8xf32>, vector<1x2x8xf32>, vector<1x2x8xf32>, vector<1x2x8xf32> -> vector<4x2x8xf32>
    %c0_81 = arith.constant 0 : index
    %c0_82 = arith.constant 0 : index
    %c0_83 = arith.constant 0 : index
    %c0_84 = arith.constant 0 : index
    %437 = vector.load %arg4[%c0_81, %c0_82, %c0_83, %c0_84] : memref<1x4x2x8xf32, #tpu.memory_space<vmem>>, vector<1x4x2x8xf32>
    %438 = vector.shape_cast %437 : vector<1x4x2x8xf32> to vector<4x2x8xf32>
    %439 = vector.shape_cast %436 : vector<4x2x8xf32> to vector<1x4x2x8xf32>
    tpu.vector_store %arg4[%c0_81, %c0_82, %c0_83, %c0_84], %439 {strides = array<i32>} : memref<1x4x2x8xf32, #tpu.memory_space<vmem>>, vector<1x4x2x8xf32>,
    return
  }
  func.func @transform_0(%arg0: i32) -> (i32, i32, i32) {
    %c0_i32 = arith.constant 0 : i32
    %c0_i32_0 = arith.constant 0 : i32
    %c0_i32_1 = arith.constant 0 : i32
    return %arg0, %c0_i32, %c0_i32_0 : i32, i32, i32
  }
  func.func @transform_1(%arg0: i32) -> (i32, i32, i32) {
    %c0_i32 = arith.constant 0 : i32
    %c0_i32_0 = arith.constant 0 : i32
    %c0_i32_1 = arith.constant 0 : i32
    return %arg0, %c0_i32, %c0_i32_0 : i32, i32, i32
  }
  func.func @transform_2(%arg0: i32) -> (i32, i32) {
    %c0_i32 = arith.constant 0 : i32
    %c0_i32_0 = arith.constant 0 : i32
    %c0_i32_1 = arith.constant 0 : i32
    return %c0_i32, %c0_i32_0 : i32, i32
  }
  func.func @transform_3(%arg0: i32) -> (i32, i32, i32, i32) {
    %c0_i32 = arith.constant 0 : i32
    %c0_i32_0 = arith.constant 0 : i32
    %c0_i32_1 = arith.constant 0 : i32
    %c0_i32_2 = arith.constant 0 : i32
    return %arg0, %c0_i32, %c0_i32_0, %c0_i32_1 : i32, i32, i32, i32
  }
}

</mosaic_0001>

<llo_original>
// kernel: tpu_custom_call.1
$region0: #{tpu_custom_call.1}
  #allocation0 [shape = 'u32[]', space=smem, size = 0x4, offset = 0x4, fixed_abs, tag = 'smem constant byte address 0x4 - core index']
  #allocation1 [shape = 'u32[144,128]{1,0:T(1,128)}', space=vmem, size = 0x12000, scoped, tag = 'internal scratch']
  %s0 = inlined_call_operand.hbm [shape: f32[1,16,32], index: 0, kind: input, shape index: {}]
  %s1 = inlined_call_operand.hbm [shape: f32[1,2,8], index: 1, kind: input, shape index: {}]
  %s2 = inlined_call_operand.hbm [shape: f32[424,256], index: 2, kind: input, shape index: {}]
  %s3 = inlined_call_operand.hbm [shape: f32[1,4,2,8], index: 3, kind: output, shape index: {}]
  %s4 = sld [smem:[#allocation0]]
  $region34: #{tpu_custom_call.1} parent=0
    _
  %s6 = ssub.s32 1, %s4
  %s7 = scalar_select 0, %s6, %s4
  $region1: #{tpu_custom_call.1} parent=0
    #allocation2 [shape = 'u8[8192]{0}', space=vmem, size = 0x2000, scoped, tag = 'input window, operand 0, single buffered']
    #allocation3 [shape = 's32[1]{0}', space=sflag, size = 0x4, scoped, tag = 'scoped memory for tpu_custom_call.1']
    #allocation4 [shape = 's32[1]{0}', space=sflag, size = 0x4, scoped, tag = 'scoped memory for tpu_custom_call.1']
    #allocation5 [shape = 'u8[1024]{0}', space=vmem, size = 0x400, scoped, tag = 'input window, operand 1, single buffered']
    #allocation6 [shape = 's32[1]{0}', space=sflag, size = 0x4, scoped, tag = 'scoped memory for tpu_custom_call.1']
    #allocation7 [shape = 'u8[434176]{0}', space=vmem, size = 0x6a000, scoped, tag = 'input window, operand 2, single buffered']
    #allocation8 [shape = 'u8[4096]{0}', space=vmem, size = 0x1000, scoped, tag = 'output window, operand 0, single buffered']
    %8 = vsyncpa [#allocation3], 0
    %9 = vsyncpa [#allocation6], 0
    %10 = vsyncpa [#allocation4], 0
    // Predicated region
    $region2: #{tpu_custom_call.1} parent=1 // pred_check
      _
    $region3: #{tpu_custom_call.1} parent=1 // pred_check_branch
      %12 = sbr.rel (0) target = $region5
    $region4: #{tpu_custom_call.1} parent=1 // pred_region
      %s14 = ssub.s32 256, 256
      %15 = vsyncadd [#allocation3], %s14
      %s16 = sshll.u32 [#allocation2], 4
      %s17 = int_to_ptr.vmem [resolvable:$true] %s16
      %22 = dma.hbm_to_vmem [thread:$0]  %s0, 256, %s17, [#allocation3], 128, 128, 8
    $region5: #{tpu_custom_call.1} parent=1 // pred_fallthru
      _
    // Predicated region
    $region6: #{tpu_custom_call.1} parent=1 // pred_check
      _
    $region7: #{tpu_custom_call.1} parent=1 // pred_check_branch
      %24 = sbr.rel (0) target = $region9
    $region8: #{tpu_custom_call.1} parent=1 // pred_region
      %s26 = ssub.s32 32, 32
      %27 = vsyncadd [#allocation6], %s26
      %s29 = sshll.u32 [#allocation5], 4
      %s30 = int_to_ptr.vmem [resolvable:$true] %s29
      %32 = dma.hbm_to_vmem [thread:$0]  %s1, 32, %s30, [#allocation6]
    $region9: #{tpu_custom_call.1} parent=1 // pred_fallthru
      _
    // Predicated region
    $region10: #{tpu_custom_call.1} parent=1 // pred_check
      _
    $region11: #{tpu_custom_call.1} parent=1 // pred_check_branch
      %34 = sbr.rel (0) target = $region13
    $region12: #{tpu_custom_call.1} parent=1 // pred_region
      %s36 = ssub.s32 13568, 13568
      %37 = vsyncadd [#allocation6], %s36
      %s38 = sshll.u32 [#allocation7], 4
      %s39 = int_to_ptr.vmem [resolvable:$true] %s38
      %44 = dma.hbm_to_vmem [thread:$0]  %s2, 13568, %s39, [#allocation6], 256, 256, 16
    $region13: #{tpu_custom_call.1} parent=1 // pred_fallthru
      _
    // Predicated region
    $region14: #{tpu_custom_call.1} parent=1 // pred_check
      _
    $region15: #{tpu_custom_call.1} parent=1 // pred_check_branch
      %46 = sbr.rel (0) target = $region17
    $region16: #{tpu_custom_call.1} parent=1 // pred_region
      %47 = dma.done [#allocation3], 256
    $region17: #{tpu_custom_call.1} parent=1 // pred_fallthru
      _
    // Predicated region
    $region18: #{tpu_custom_call.1} parent=1 // pred_check
      _
    $region19: #{tpu_custom_call.1} parent=1 // pred_check_branch
      %49 = sbr.rel (0) target = $region21
    $region20: #{tpu_custom_call.1} parent=1 // pred_region
      %50 = dma.done [#allocation6], 32
    $region21: #{tpu_custom_call.1} parent=1 // pred_fallthru
      _
    // Predicated region
    $region22: #{tpu_custom_call.1} parent=1 // pred_check
      _
    $region23: #{tpu_custom_call.1} parent=1 // pred_check_branch
      %52 = sbr.rel (0) target = $region25
    $region24: #{tpu_custom_call.1} parent=1 // pred_region
      %53 = dma.done [#allocation6], 13568
    $region25: #{tpu_custom_call.1} parent=1 // pred_fallthru
      _
    %v54 = vld [vmem:[#allocation2] sm:$0xff]
    %v55 = vld [vmem:[#allocation2 + $0x8] sm:$0xff]
    %v56 = vld [vmem:[#allocation7] sm:$0xff]
    %v57 = vld [vmem:[#allocation7 + $0x10] sm:$0xff]
    %v58 = vld [vmem:[#allocation7 + $0x20] sm:$0xff]
    %v59 = vld [vmem:[#allocation7 + $0x30] sm:$0xff]
    %v60 = vld [vmem:[#allocation7 + $0x40] ss:$0 sm:$0xff]
    %vm61 = vcmask 261120
    %v63 = vsel %vm61, %v54, 0
    %v66 = vsel %vm61, %v55, 0
    %68 = vmatprep.subr.mxu0 0.0
    %69 = vmatpush1.msra.mxu0 0.0
    %70 = vmatprep.subr.mxu0 0.0
    %71 = vmatpush1.msra.mxu0 0.0
    %72 = vmatprep.subr.mxu0 0.0
    %73 = vmatpush1.msra.mxu0 0.0
    %74 = vmatprep.subr.mxu0 0.0
    %75 = vmatpush1.msra.mxu0 0.0
    %76 = vmatprep.subr.mxu0 0.0
    %77 = vmatpush1.msra.mxu0 0.0
    %78 = vmatprep.subr.mxu0 0.0
    %79 = vmatpush1.msra.mxu0 0.0
    %80 = vmatprep.subr.mxu0 0.0
    %81 = vmatpush1.msra.mxu0 0.0
    %82 = vmatprep.subr.mxu0 0.0
    %83 = vmatpush1.msra.mxu0 0.0
    %84 = vmatprep.subr.mxu0 0.0
    %85 = vmatpush1.msra.mxu0 0.0
    %86 = vmatprep.subr.mxu0 0.0
    %87 = vmatpush1.msra.mxu0 0.0
    %88 = vmatprep.subr.mxu0 0.0
    %89 = vmatpush1.msra.mxu0 0.0
    %90 = vmatprep.subr.mxu0 0.0
    %91 = vmatpush1.msra.mxu0 0.0
    %92 = vmatprep.subr.mxu0 0.0
    %93 = vmatpush1.msra.mxu0 %v59
    %94 = vmatprep.subr.mxu0 0.0
    %95 = vmatpush1.msra.mxu0 %v58
    %96 = vmatprep.subr.mxu0 0.0
    %97 = vmatpush1.msra.mxu0 %v57
    %98 = vmatprep.subr.mxu0 0.0
    %99 = vmatpush1.msra.mxu0 %v56
    %100 = vmatprep.subr.mxu0 0.0
    %101 = vmatpush2.msra.mxu0 0.0
    %102 = vmatprep.subr.mxu0 0.0
    %103 = vmatpush2.msra.mxu0 0.0
    %104 = vmatprep.subr.mxu0 0.0
    %105 = vmatpush2.msra.mxu0 0.0
    %106 = vmatprep.subr.mxu0 0.0
    %107 = vmatpush2.msra.mxu0 0.0
    %108 = vmatprep.subr.mxu0 0.0
    %109 = vmatpush2.msra.mxu0 0.0
    %110 = vmatprep.subr.mxu0 0.0
    %111 = vmatpush2.msra.mxu0 0.0
    %112 = vmatprep.subr.mxu0 0.0
    %113 = vmatpush2.msra.mxu0 0.0
    %114 = vmatprep.subr.mxu0 0.0
    %115 = vmatpush2.msra.mxu0 0.0
    %116 = vmatprep.subr.mxu0 0.0
    %117 = vmatpush2.msra.mxu0 0.0
    %118 = vmatprep.subr.mxu0 0.0
    %119 = vmatpush2.msra.mxu0 0.0
    %120 = vmatprep.subr.mxu0 0.0
    %121 = vmatpush2.msra.mxu0 0.0
    %122 = vmatprep.subr.mxu0 0.0
    %123 = vmatpush2.msra.mxu0 0.0
    %124 = vmatprep.subr.mxu0 0.0
    %125 = vmatpush2.msra.mxu0 0.0
    %126 = vmatprep.subr.mxu0 0.0
    %127 = vmatpush2.msra.mxu0 0.0
    %128 = vmatprep.subr.mxu0 0.0
    %129 = vmatpush2.msra.mxu0 0.0
    %130 = vmatprep.subr.mxu0 0.0
    %131 = vmatpush2.msra.mxu0 0.0
    %132 = vmatprep.mubr.f32.mxu0 0.0
    %133 = vmatmul.mubr.f32.gmra.mxu0 %v63
    %v134 = vpop.f32.mrf.mxu0
    %v135 = vadd.f32 %v60, %v134
    %v136 = vpop.f32.mrf.mxu0
    %137 = vmatprep.mubr.f32.mxu0 0.0
    %138 = vmatmul.mubr.f32.gmra.mxu0 %v66
    %v139 = vpop.f32.mrf.mxu0
    %v140 = vadd.f32 %v60, %v139
    %v141 = vpop.f32.mrf.mxu0
    %142 = vdwg.mxu0
    %v143 = vmax.f32 %v135, 0.0
    %v144 = vmax.f32 %v140, 0.0
    %v145 = vld [vmem:[#allocation7 + $0x50] sm:$0xff]
    %v146 = vld [vmem:[#allocation7 + $0x60] sm:$0xff]
    %v147 = vld [vmem:[#allocation7 + $0x70] sm:$0xff]
    %v148 = vld [vmem:[#allocation7 + $0x80] sm:$0xff]
    %v149 = vld [vmem:[#allocation7 + $0x90] sm:$0xff]
    %v150 = vld [vmem:[#allocation7 + $0xa0] sm:$0xff]
    %v151 = vld [vmem:[#allocation7 + $0xb0] sm:$0xff]
    %v152 = vld [vmem:[#allocation7 + $0xc0] sm:$0xff]
    %v153 = vld [vmem:[#allocation7 + $0xd0] sm:$0xff]
    %v154 = vld [vmem:[#allocation7 + $0xe0] sm:$0xff]
    %v155 = vld [vmem:[#allocation7 + $0xf0] sm:$0xff]
    %v156 = vld [vmem:[#allocation7 + $0x100] sm:$0xff]
    %v157 = vld [vmem:[#allocation7 + $0x110] sm:$0xff]
    %v158 = vld [vmem:[#allocation7 + $0x120] sm:$0xff]
    %v159 = vld [vmem:[#allocation7 + $0x130] sm:$0xff]
    %v160 = vld [vmem:[#allocation7 + $0x140] sm:$0xff]
    %v161 = vld [vmem:[#allocation7 + $0x190] ss:$0 sm:$0xff]
    %162 = vmatprep.subr.mxu0 0.0
    %163 = vmatpush1.msra.mxu0 %v160
    %164 = vmatprep.subr.mxu0 0.0
    %165 = vmatpush1.msra.mxu0 %v159
    %166 = vmatprep.subr.mxu0 0.0
    %167 = vmatpush1.msra.mxu0 %v158
    %168 = vmatprep.subr.mxu0 0.0
    %169 = vmatpush1.msra.mxu0 %v157
    %170 = vmatprep.subr.mxu0 0.0
    %171 = vmatpush1.msra.mxu0 %v156
    %172 = vmatprep.subr.mxu0 0.0
    %173 = vmatpush1.msra.mxu0 %v155
    %174 = vmatprep.subr.mxu0 0.0
    %175 = vmatpush1.msra.mxu0 %v154
    %176 = vmatprep.subr.mxu0 0.0
    %177 = vmatpush1.msra.mxu0 %v153
    %178 = vmatprep.subr.mxu0 0.0
    %179 = vmatpush1.msra.mxu0 %v152
    %180 = vmatprep.subr.mxu0 0.0
    %181 = vmatpush1.msra.mxu0 %v151
    %182 = vmatprep.subr.mxu0 0.0
    %183 = vmatpush1.msra.mxu0 %v150
    %184 = vmatprep.subr.mxu0 0.0
    %185 = vmatpush1.msra.mxu0 %v149
    %186 = vmatprep.subr.mxu0 0.0
    %187 = vmatpush1.msra.mxu0 %v148
    %188 = vmatprep.subr.mxu0 0.0
    %189 = vmatpush1.msra.mxu0 %v147
    %190 = vmatprep.subr.mxu0 0.0
    %191 = vmatpush1.msra.mxu0 %v146
    %192 = vmatprep.subr.mxu0 0.0
    %193 = vmatpush1.msra.mxu0 %v145
    %194 = vmatprep.subr.mxu0 0.0
    %195 = vmatpush2.msra.mxu0 0.0
    %196 = vmatprep.subr.mxu0 0.0
    %197 = vmatpush2.msra.mxu0 0.0
    %198 = vmatprep.subr.mxu0 0.0
    %199 = vmatpush2.msra.mxu0 0.0
    %200 = vmatprep.subr.mxu0 0.0
    %201 = vmatpush2.msra.mxu0 0.0
    %202 = vmatprep.subr.mxu0 0.0
    %203 = vmatpush2.msra.mxu0 0.0
    %204 = vmatprep.subr.mxu0 0.0
    %205 = vmatpush2.msra.mxu0 0.0
    %206 = vmatprep.subr.mxu0 0.0
    %207 = vmatpush2.msra.mxu0 0.0
    %208 = vmatprep.subr.mxu0 0.0
    %209 = vmatpush2.msra.mxu0 0.0
    %210 = vmatprep.subr.mxu0 0.0
    %211 = vmatpush2.msra.mxu0 0.0
    %212 = vmatprep.subr.mxu0 0.0
    %213 = vmatpush2.msra.mxu0 0.0
    %214 = vmatprep.subr.mxu0 0.0
    %215 = vmatpush2.msra.mxu0 0.0
    %216 = vmatprep.subr.mxu0 0.0
    %217 = vmatpush2.msra.mxu0 0.0
    %218 = vmatprep.subr.mxu0 0.0
    %219 = vmatpush2.msra.mxu0 0.0
    %220 = vmatprep.subr.mxu0 0.0
    %221 = vmatpush2.msra.mxu0 0.0
    %222 = vmatprep.subr.mxu0 0.0
    %223 = vmatpush2.msra.mxu0 0.0
    %224 = vmatprep.subr.mxu0 0.0
    %225 = vmatpush2.msra.mxu0 0.0
    %226 = vmatprep.mubr.f32.mxu0 0.0
    %227 = vmatmul.mubr.f32.gmra.mxu0 %v143
    %v228 = vpop.f32.mrf.mxu0
    %v229 = vadd.f32 %v161, %v228
    %v230 = vpop.f32.mrf.mxu0
    %231 = vmatprep.mubr.f32.mxu0 0.0
    %232 = vmatmul.mubr.f32.gmra.mxu0 %v144
    %v233 = vpop.f32.mrf.mxu0
    %v234 = vadd.f32 %v161, %v233
    %v235 = vpop.f32.mrf.mxu0
    %236 = vdwg.mxu0
    %v237 = vld [vmem:[#allocation7 + $0x150] sm:$0xff]
    %v238 = vld [vmem:[#allocation7 + $0x160] sm:$0xff]
    %v239 = vld [vmem:[#allocation7 + $0x170] sm:$0xff]
    %v240 = vld [vmem:[#allocation7 + $0x180] sm:$0xff]
    %v241 = vld [vmem:[#allocation7 + $0x1a0] ss:$0 sm:$0xff]
    %v243 = vsel %vm61, 0.0, 0
    %245 = vmatprep.subr.mxu0 0.0
    %246 = vmatpush1.msra.mxu0 0.0
    %247 = vmatprep.subr.mxu0 0.0
    %248 = vmatpush1.msra.mxu0 0.0
    %249 = vmatprep.subr.mxu0 0.0
    %250 = vmatpush1.msra.mxu0 0.0
    %251 = vmatprep.subr.mxu0 0.0
    %252 = vmatpush1.msra.mxu0 0.0
    %253 = vmatprep.subr.mxu0 0.0
    %254 = vmatpush1.msra.mxu0 0.0
    %255 = vmatprep.subr.mxu0 0.0
    %256 = vmatpush1.msra.mxu0 0.0
    %257 = vmatprep.subr.mxu0 0.0
    %258 = vmatpush1.msra.mxu0 0.0
    %259 = vmatprep.subr.mxu0 0.0
    %260 = vmatpush1.msra.mxu0 0.0
    %261 = vmatprep.subr.mxu0 0.0
    %262 = vmatpush1.msra.mxu0 0.0
    %263 = vmatprep.subr.mxu0 0.0
    %264 = vmatpush1.msra.mxu0 0.0
    %265 = vmatprep.subr.mxu0 0.0
    %266 = vmatpush1.msra.mxu0 0.0
    %267 = vmatprep.subr.mxu0 0.0
    %268 = vmatpush1.msra.mxu0 0.0
    %269 = vmatprep.subr.mxu0 0.0
    %270 = vmatpush1.msra.mxu0 %v240
    %271 = vmatprep.subr.mxu0 0.0
    %272 = vmatpush1.msra.mxu0 %v239
    %273 = vmatprep.subr.mxu0 0.0
    %274 = vmatpush1.msra.mxu0 %v238
    %275 = vmatprep.subr.mxu0 0.0
    %276 = vmatpush1.msra.mxu0 %v237
    %277 = vmatprep.subr.mxu0 0.0
    %278 = vmatpush2.msra.mxu0 0.0
    %279 = vmatprep.subr.mxu0 0.0
    %280 = vmatpush2.msra.mxu0 0.0
    %281 = vmatprep.subr.mxu0 0.0
    %282 = vmatpush2.msra.mxu0 0.0
    %283 = vmatprep.subr.mxu0 0.0
    %284 = vmatpush2.msra.mxu0 0.0
    %285 = vmatprep.subr.mxu0 0.0
    %286 = vmatpush2.msra.mxu0 0.0
    %287 = vmatprep.subr.mxu0 0.0
    %288 = vmatpush2.msra.mxu0 0.0
    %289 = vmatprep.subr.mxu0 0.0
    %290 = vmatpush2.msra.mxu0 0.0
    %291 = vmatprep.subr.mxu0 0.0
    %292 = vmatpush2.msra.mxu0 0.0
    %293 = vmatprep.subr.mxu0 0.0
    %294 = vmatpush2.msra.mxu0 0.0
    %295 = vmatprep.subr.mxu0 0.0
    %296 = vmatpush2.msra.mxu0 0.0
    %297 = vmatprep.subr.mxu0 0.0
    %298 = vmatpush2.msra.mxu0 0.0
    %299 = vmatprep.subr.mxu0 0.0
    %300 = vmatpush2.msra.mxu0 0.0
    %301 = vmatprep.subr.mxu0 0.0
    %302 = vmatpush2.msra.mxu0 0.0
    %303 = vmatprep.subr.mxu0 0.0
    %304 = vmatpush2.msra.mxu0 0.0
    %305 = vmatprep.subr.mxu0 0.0
    %306 = vmatpush2.msra.mxu0 0.0
    %307 = vmatprep.subr.mxu0 0.0
    %308 = vmatpush2.msra.mxu0 0.0
    %309 = vmatprep.mubr.f32.mxu0 0.0
    %310 = vmatmul.mubr.f32.gmra.mxu0 %v243
    %v311 = vpop.f32.mrf.mxu0
    %v312 = vadd.f32 %v241, %v311
    %v313 = vpop.f32.mrf.mxu0
    %314 = vdwg.mxu0
    %v315 = vadd.f32 %v229, %v312
    %v316 = vxor.u32 %v315, 2147483648
    %v317 = vmul.f32 %v316, 1.442695
    %v318 = vpow.pop %v317
    %v319 = vadd.f32 %v318, 1.0
    %v320 = vrcp.pop %v319
    %v321 = vmul.f32 1.0, %v320
    %323 = vrot.lane.b32.xlu0 %v312, 64
    %v324 = vpop.permute.xlu0 %323
    %v326 = vmul.f32 %v321, %v324
    %328 = vrot.lane.b32.xlu0 %v326, 64
    %v329 = vpop.permute.xlu0 %328
    %v331 = vadd.f32 %v229, %v329
    %v332 = vtanh.pop %v331
    %v333 = vsub.f32 1.0, %v321
    %335 = vrot.lane.b32.xlu0 %v332, 96
    %v336 = vpop.permute.xlu0 %335
    %v338 = vmul.f32 %v333, %v336
    %v339 = vmul.f32 %v321, 0.0
    %v340 = vadd.f32 %v338, %v339
    %342 = vrot.lane.b32.xlu0 %v340, 96
    %v343 = vpop.permute.xlu0 %342
    %v344 = vsel %vm61, %v343, 0
    %346 = vmatprep.subr.mxu0 0.0
    %347 = vmatpush1.msra.mxu0 0.0
    %348 = vmatprep.subr.mxu0 0.0
    %349 = vmatpush1.msra.mxu0 0.0
    %350 = vmatprep.subr.mxu0 0.0
    %351 = vmatpush1.msra.mxu0 0.0
    %352 = vmatprep.subr.mxu0 0.0
    %353 = vmatpush1.msra.mxu0 0.0
    %354 = vmatprep.subr.mxu0 0.0
    %355 = vmatpush1.msra.mxu0 0.0
    %356 = vmatprep.subr.mxu0 0.0
    %357 = vmatpush1.msra.mxu0 0.0
    %358 = vmatprep.subr.mxu0 0.0
    %359 = vmatpush1.msra.mxu0 0.0
    %360 = vmatprep.subr.mxu0 0.0
    %361 = vmatpush1.msra.mxu0 0.0
    %362 = vmatprep.subr.mxu0 0.0
    %363 = vmatpush1.msra.mxu0 0.0
    %364 = vmatprep.subr.mxu0 0.0
    %365 = vmatpush1.msra.mxu0 0.0
    %366 = vmatprep.subr.mxu0 0.0
    %367 = vmatpush1.msra.mxu0 0.0
    %368 = vmatprep.subr.mxu0 0.0
    %369 = vmatpush1.msra.mxu0 0.0
    %370 = vmatprep.subr.mxu0 0.0
    %371 = vmatpush1.msra.mxu0 %v240
    %372 = vmatprep.subr.mxu0 0.0
    %373 = vmatpush1.msra.mxu0 %v239
    %374 = vmatprep.subr.mxu0 0.0
    %375 = vmatpush1.msra.mxu0 %v238
    %376 = vmatprep.subr.mxu0 0.0
    %377 = vmatpush1.msra.mxu0 %v237
    %378 = vmatprep.subr.mxu0 0.0
    %379 = vmatpush2.msra.mxu0 0.0
    %380 = vmatprep.subr.mxu0 0.0
    %381 = vmatpush2.msra.mxu0 0.0
    %382 = vmatprep.subr.mxu0 0.0
    %383 = vmatpush2.msra.mxu0 0.0
    %384 = vmatprep.subr.mxu0 0.0
    %385 = vmatpush2.msra.mxu0 0.0
    %386 = vmatprep.subr.mxu0 0.0
    %387 = vmatpush2.msra.mxu0 0.0
    %388 = vmatprep.subr.mxu0 0.0
    %389 = vmatpush2.msra.mxu0 0.0
    %390 = vmatprep.subr.mxu0 0.0
    %391 = vmatpush2.msra.mxu0 0.0
    %392 = vmatprep.subr.mxu0 0.0
    %393 = vmatpush2.msra.mxu0 0.0
    %394 = vmatprep.subr.mxu0 0.0
    %395 = vmatpush2.msra.mxu0 0.0
    %396 = vmatprep.subr.mxu0 0.0
    %397 = vmatpush2.msra.mxu0 0.0
    %398 = vmatprep.subr.mxu0 0.0
    %399 = vmatpush2.msra.mxu0 0.0
    %400 = vmatprep.subr.mxu0 0.0
    %401 = vmatpush2.msra.mxu0 0.0
    %402 = vmatprep.subr.mxu0 0.0
    %403 = vmatpush2.msra.mxu0 0.0
    %404 = vmatprep.subr.mxu0 0.0
    %405 = vmatpush2.msra.mxu0 0.0
    %406 = vmatprep.subr.mxu0 0.0
    %407 = vmatpush2.msra.mxu0 0.0
    %408 = vmatprep.subr.mxu0 0.0
    %409 = vmatpush2.msra.mxu0 0.0
    %410 = vmatprep.mubr.f32.mxu0 0.0
    %411 = vmatmul.mubr.f32.gmra.mxu0 %v344
    %v412 = vpop.f32.mrf.mxu0
    %v413 = vadd.f32 %v241, %v412
    %v414 = vpop.f32.mrf.mxu0
    %415 = vdwg.mxu0
    %v417 = vrot.slane %v413, 6
    %v419 = vadd.f32 %v229, %v417
    %v420 = vxor.u32 %v419, 2147483648
    %v421 = vmul.f32 %v420, 1.442695
    %v422 = vpow.pop %v421
    %v423 = vadd.f32 %v422, 1.0
    %v424 = vrcp.pop %v423
    %v425 = vmul.f32 1.0, %v424
    %426 = vrot.lane.b32.xlu0 %v417, 64
    %v427 = vpop.permute.xlu0 %426
    %v429 = vmul.f32 %v425, %v427
    %431 = vrot.lane.b32.xlu0 %v429, 64
    %v432 = vpop.permute.xlu0 %431
    %v434 = vadd.f32 %v229, %v432
    %v435 = vtanh.pop %v434
    %v436 = vsub.f32 1.0, %v425
    %438 = vrot.lane.b32.xlu0 %v435, 96
    %v439 = vpop.permute.xlu0 %438
    %v441 = vmul.f32 %v436, %v439
    %v442 = vrot.slane %v340, 6
    %v444 = vmul.f32 %v425, %v442
    %v445 = vadd.f32 %v441, %v444
    %v447 = vrot.slane %v445, 2
    %448 = vrot.lane.b32.xlu0 %v447, 96
    %v449 = vpop.permute.xlu0 %448
    %v450 = vsel %vm61, %v449, 0
    %452 = vmatprep.subr.mxu0 0.0
    %453 = vmatpush1.msra.mxu0 0.0
    %454 = vmatprep.subr.mxu0 0.0
    %455 = vmatpush1.msra.mxu0 0.0
    %456 = vmatprep.subr.mxu0 0.0
    %457 = vmatpush1.msra.mxu0 0.0
    %458 = vmatprep.subr.mxu0 0.0
    %459 = vmatpush1.msra.mxu0 0.0
    %460 = vmatprep.subr.mxu0 0.0
    %461 = vmatpush1.msra.mxu0 0.0
    %462 = vmatprep.subr.mxu0 0.0
    %463 = vmatpush1.msra.mxu0 0.0
    %464 = vmatprep.subr.mxu0 0.0
    %465 = vmatpush1.msra.mxu0 0.0
    %466 = vmatprep.subr.mxu0 0.0
    %467 = vmatpush1.msra.mxu0 0.0
    %468 = vmatprep.subr.mxu0 0.0
    %469 = vmatpush1.msra.mxu0 0.0
    %470 = vmatprep.subr.mxu0 0.0
    %471 = vmatpush1.msra.mxu0 0.0
    %472 = vmatprep.subr.mxu0 0.0
    %473 = vmatpush1.msra.mxu0 0.0
    %474 = vmatprep.subr.mxu0 0.0
    %475 = vmatpush1.msra.mxu0 0.0
    %476 = vmatprep.subr.mxu0 0.0
    %477 = vmatpush1.msra.mxu0 %v240
    %478 = vmatprep.subr.mxu0 0.0
    %479 = vmatpush1.msra.mxu0 %v239
    %480 = vmatprep.subr.mxu0 0.0
    %481 = vmatpush1.msra.mxu0 %v238
    %482 = vmatprep.subr.mxu0 0.0
    %483 = vmatpush1.msra.mxu0 %v237
    %484 = vmatprep.subr.mxu0 0.0
    %485 = vmatpush2.msra.mxu0 0.0
    %486 = vmatprep.subr.mxu0 0.0
    %487 = vmatpush2.msra.mxu0 0.0
    %488 = vmatprep.subr.mxu0 0.0
    %489 = vmatpush2.msra.mxu0 0.0
    %490 = vmatprep.subr.mxu0 0.0
    %491 = vmatpush2.msra.mxu0 0.0
    %492 = vmatprep.subr.mxu0 0.0
    %493 = vmatpush2.msra.mxu0 0.0
    %494 = vmatprep.subr.mxu0 0.0
    %495 = vmatpush2.msra.mxu0 0.0
    %496 = vmatprep.subr.mxu0 0.0
    %497 = vmatpush2.msra.mxu0 0.0
    %498 = vmatprep.subr.mxu0 0.0
    %499 = vmatpush2.msra.mxu0 0.0
    %500 = vmatprep.subr.mxu0 0.0
    %501 = vmatpush2.msra.mxu0 0.0
    %502 = vmatprep.subr.mxu0 0.0
    %503 = vmatpush2.msra.mxu0 0.0
    %504 = vmatprep.subr.mxu0 0.0
    %505 = vmatpush2.msra.mxu0 0.0
    %506 = vmatprep.subr.mxu0 0.0
    %507 = vmatpush2.msra.mxu0 0.0
    %508 = vmatprep.subr.mxu0 0.0
    %509 = vmatpush2.msra.mxu0 0.0
    %510 = vmatprep.subr.mxu0 0.0
    %511 = vmatpush2.msra.mxu0 0.0
    %512 = vmatprep.subr.mxu0 0.0
    %513 = vmatpush2.msra.mxu0 0.0
    %514 = vmatprep.subr.mxu0 0.0
    %515 = vmatpush2.msra.mxu0 0.0
    %516 = vmatprep.mubr.f32.mxu0 0.0
    %517 = vmatmul.mubr.f32.gmra.mxu0 %v450
    %v518 = vpop.f32.mrf.mxu0
    %v519 = vadd.f32 %v241, %v518
    %v520 = vpop.f32.mrf.mxu0
    %521 = vdwg.mxu0
    %v523 = vrot.slane %v519, 4
    %v525 = vadd.f32 %v229, %v523
    %v526 = vxor.u32 %v525, 2147483648
    %v527 = vmul.f32 %v526, 1.442695
    %v528 = vpow.pop %v527
    %v529 = vadd.f32 %v528, 1.0
    %v530 = vrcp.pop %v529
    %v531 = vmul.f32 1.0, %v530
    %532 = vrot.lane.b32.xlu0 %v523, 64
    %v533 = vpop.permute.xlu0 %532
    %v535 = vmul.f32 %v531, %v533
    %537 = vrot.lane.b32.xlu0 %v535, 64
    %v538 = vpop.permute.xlu0 %537
    %v540 = vadd.f32 %v229, %v538
    %v541 = vtanh.pop %v540
    %v542 = vsub.f32 1.0, %v531
    %544 = vrot.lane.b32.xlu0 %v541, 96
    %v545 = vpop.permute.xlu0 %544
    %v547 = vmul.f32 %v542, %v545
    %v548 = vrot.slane %v445, 6
    %v550 = vmul.f32 %v531, %v548
    %v551 = vadd.f32 %v547, %v550
    %v553 = vrot.slane %v551, 4
    %554 = vrot.lane.b32.xlu0 %v553, 96
    %v555 = vpop.permute.xlu0 %554
    %v556 = vsel %vm61, %v555, 0
    %558 = vmatprep.subr.mxu0 0.0
    %559 = vmatpush1.msra.mxu0 0.0
    %560 = vmatprep.subr.mxu0 0.0
    %561 = vmatpush1.msra.mxu0 0.0
    %562 = vmatprep.subr.mxu0 0.0
    %563 = vmatpush1.msra.mxu0 0.0
    %564 = vmatprep.subr.mxu0 0.0
    %565 = vmatpush1.msra.mxu0 0.0
    %566 = vmatprep.subr.mxu0 0.0
    %567 = vmatpush1.msra.mxu0 0.0
    %568 = vmatprep.subr.mxu0 0.0
    %569 = vmatpush1.msra.mxu0 0.0
    %570 = vmatprep.subr.mxu0 0.0
    %571 = vmatpush1.msra.mxu0 0.0
    %572 = vmatprep.subr.mxu0 0.0
    %573 = vmatpush1.msra.mxu0 0.0
    %574 = vmatprep.subr.mxu0 0.0
    %575 = vmatpush1.msra.mxu0 0.0
    %576 = vmatprep.subr.mxu0 0.0
    %577 = vmatpush1.msra.mxu0 0.0
    %578 = vmatprep.subr.mxu0 0.0
    %579 = vmatpush1.msra.mxu0 0.0
    %580 = vmatprep.subr.mxu0 0.0
    %581 = vmatpush1.msra.mxu0 0.0
    %582 = vmatprep.subr.mxu0 0.0
    %583 = vmatpush1.msra.mxu0 %v240
    %584 = vmatprep.subr.mxu0 0.0
    %585 = vmatpush1.msra.mxu0 %v239
    %586 = vmatprep.subr.mxu0 0.0
    %587 = vmatpush1.msra.mxu0 %v238
    %588 = vmatprep.subr.mxu0 0.0
    %589 = vmatpush1.msra.mxu0 %v237
    %590 = vmatprep.subr.mxu0 0.0
    %591 = vmatpush2.msra.mxu0 0.0
    %592 = vmatprep.subr.mxu0 0.0
    %593 = vmatpush2.msra.mxu0 0.0
    %594 = vmatprep.subr.mxu0 0.0
    %595 = vmatpush2.msra.mxu0 0.0
    %596 = vmatprep.subr.mxu0 0.0
    %597 = vmatpush2.msra.mxu0 0.0
    %598 = vmatprep.subr.mxu0 0.0
    %599 = vmatpush2.msra.mxu0 0.0
    %600 = vmatprep.subr.mxu0 0.0
    %601 = vmatpush2.msra.mxu0 0.0
    %602 = vmatprep.subr.mxu0 0.0
    %603 = vmatpush2.msra.mxu0 0.0
    %604 = vmatprep.subr.mxu0 0.0
    %605 = vmatpush2.msra.mxu0 0.0
    %606 = vmatprep.subr.mxu0 0.0
    %607 = vmatpush2.msra.mxu0 0.0
    %608 = vmatprep.subr.mxu0 0.0
    %609 = vmatpush2.msra.mxu0 0.0
    %610 = vmatprep.subr.mxu0 0.0
    %611 = vmatpush2.msra.mxu0 0.0
    %612 = vmatprep.subr.mxu0 0.0
    %613 = vmatpush2.msra.mxu0 0.0
    %614 = vmatprep.subr.mxu0 0.0
    %615 = vmatpush2.msra.mxu0 0.0
    %616 = vmatprep.subr.mxu0 0.0
    %617 = vmatpush2.msra.mxu0 0.0
    %618 = vmatprep.subr.mxu0 0.0
    %619 = vmatpush2.msra.mxu0 0.0
    %620 = vmatprep.subr.mxu0 0.0
    %621 = vmatpush2.msra.mxu0 0.0
    %622 = vmatprep.mubr.f32.mxu0 0.0
    %623 = vmatmul.mubr.f32.gmra.mxu0 %v556
    %v624 = vpop.f32.mrf.mxu0
    %v625 = vadd.f32 %v241, %v624
    %v626 = vpop.f32.mrf.mxu0
    %627 = vdwg.mxu0
    %v629 = vrot.slane %v625, 2
    %v631 = vadd.f32 %v229, %v629
    %v632 = vxor.u32 %v631, 2147483648
    %v633 = vmul.f32 %v632, 1.442695
    %v634 = vpow.pop %v633
    %v635 = vadd.f32 %v634, 1.0
    %v636 = vrcp.pop %v635
    %v637 = vmul.f32 1.0, %v636
    %638 = vrot.lane.b32.xlu0 %v629, 64
    %v639 = vpop.permute.xlu0 %638
    %v641 = vmul.f32 %v637, %v639
    %643 = vrot.lane.b32.xlu0 %v641, 64
    %v644 = vpop.permute.xlu0 %643
    %v646 = vadd.f32 %v229, %v644
    %v647 = vtanh.pop %v646
    %v648 = vsub.f32 1.0, %v637
    %650 = vrot.lane.b32.xlu0 %v647, 96
    %v651 = vpop.permute.xlu0 %650
    %v653 = vmul.f32 %v648, %v651
    %v654 = vrot.slane %v551, 6
    %v656 = vmul.f32 %v637, %v654
    %v657 = vadd.f32 %v653, %v656
    %v659 = vrot.slane %v657, 6
    %660 = vrot.lane.b32.xlu0 %v659, 96
    %v661 = vpop.permute.xlu0 %660
    %v662 = vsel %vm61, %v661, 0
    %664 = vmatprep.subr.mxu0 0.0
    %665 = vmatpush1.msra.mxu0 0.0
    %666 = vmatprep.subr.mxu0 0.0
    %667 = vmatpush1.msra.mxu0 0.0
    %668 = vmatprep.subr.mxu0 0.0
    %669 = vmatpush1.msra.mxu0 0.0
    %670 = vmatprep.subr.mxu0 0.0
    %671 = vmatpush1.msra.mxu0 0.0
    %672 = vmatprep.subr.mxu0 0.0
    %673 = vmatpush1.msra.mxu0 0.0
    %674 = vmatprep.subr.mxu0 0.0
    %675 = vmatpush1.msra.mxu0 0.0
    %676 = vmatprep.subr.mxu0 0.0
    %677 = vmatpush1.msra.mxu0 0.0
    %678 = vmatprep.subr.mxu0 0.0
    %679 = vmatpush1.msra.mxu0 0.0
    %680 = vmatprep.subr.mxu0 0.0
    %681 = vmatpush1.msra.mxu0 0.0
    %682 = vmatprep.subr.mxu0 0.0
    %683 = vmatpush1.msra.mxu0 0.0
    %684 = vmatprep.subr.mxu0 0.0
    %685 = vmatpush1.msra.mxu0 0.0
    %686 = vmatprep.subr.mxu0 0.0
    %687 = vmatpush1.msra.mxu0 0.0
    %688 = vmatprep.subr.mxu0 0.0
    %689 = vmatpush1.msra.mxu0 %v240
    %690 = vmatprep.subr.mxu0 0.0
    %691 = vmatpush1.msra.mxu0 %v239
    %692 = vmatprep.subr.mxu0 0.0
    %693 = vmatpush1.msra.mxu0 %v238
    %694 = vmatprep.subr.mxu0 0.0
    %695 = vmatpush1.msra.mxu0 %v237
    %696 = vmatprep.subr.mxu0 0.0
    %697 = vmatpush2.msra.mxu0 0.0
    %698 = vmatprep.subr.mxu0 0.0
    %699 = vmatpush2.msra.mxu0 0.0
    %700 = vmatprep.subr.mxu0 0.0
    %701 = vmatpush2.msra.mxu0 0.0
    %702 = vmatprep.subr.mxu0 0.0
    %703 = vmatpush2.msra.mxu0 0.0
    %704 = vmatprep.subr.mxu0 0.0
    %705 = vmatpush2.msra.mxu0 0.0
    %706 = vmatprep.subr.mxu0 0.0
    %707 = vmatpush2.msra.mxu0 0.0
    %708 = vmatprep.subr.mxu0 0.0
    %709 = vmatpush2.msra.mxu0 0.0
    %710 = vmatprep.subr.mxu0 0.0
    %711 = vmatpush2.msra.mxu0 0.0
    %712 = vmatprep.subr.mxu0 0.0
    %713 = vmatpush2.msra.mxu0 0.0
    %714 = vmatprep.subr.mxu0 0.0
    %715 = vmatpush2.msra.mxu0 0.0
    %716 = vmatprep.subr.mxu0 0.0
    %717 = vmatpush2.msra.mxu0 0.0
    %718 = vmatprep.subr.mxu0 0.0
    %719 = vmatpush2.msra.mxu0 0.0
    %720 = vmatprep.subr.mxu0 0.0
    %721 = vmatpush2.msra.mxu0 0.0
    %722 = vmatprep.subr.mxu0 0.0
    %723 = vmatpush2.msra.mxu0 0.0
    %724 = vmatprep.subr.mxu0 0.0
    %725 = vmatpush2.msra.mxu0 0.0
    %726 = vmatprep.subr.mxu0 0.0
    %727 = vmatpush2.msra.mxu0 0.0
    %728 = vmatprep.mubr.f32.mxu0 0.0
    %729 = vmatmul.mubr.f32.gmra.mxu0 %v662
    %v730 = vpop.f32.mrf.mxu0
    %v731 = vadd.f32 %v241, %v730
    %v732 = vpop.f32.mrf.mxu0
    %733 = vdwg.mxu0
    %v734 = vadd.f32 %v234, %v731
    %v735 = vxor.u32 %v734, 2147483648
    %v736 = vmul.f32 %v735, 1.442695
    %v737 = vpow.pop %v736
    %v738 = vadd.f32 %v737, 1.0
    %v739 = vrcp.pop %v738
    %v740 = vmul.f32 1.0, %v739
    %742 = vrot.lane.b32.xlu0 %v731, 64
    %v743 = vpop.permute.xlu0 %742
    %v745 = vmul.f32 %v740, %v743
    %747 = vrot.lane.b32.xlu0 %v745, 64
    %v748 = vpop.permute.xlu0 %747
    %v750 = vadd.f32 %v234, %v748
    %v751 = vtanh.pop %v750
    %v752 = vsub.f32 1.0, %v740
    %754 = vrot.lane.b32.xlu0 %v751, 96
    %v755 = vpop.permute.xlu0 %754
    %v757 = vmul.f32 %v752, %v755
    %v759 = vmul.f32 %v740, %v659
    %v760 = vadd.f32 %v757, %v759
    %762 = vrot.lane.b32.xlu0 %v760, 96
    %v763 = vpop.permute.xlu0 %762
    %v764 = vsel %vm61, %v763, 0
    %766 = vmatprep.subr.mxu0 0.0
    %767 = vmatpush1.msra.mxu0 0.0
    %768 = vmatprep.subr.mxu0 0.0
    %769 = vmatpush1.msra.mxu0 0.0
    %770 = vmatprep.subr.mxu0 0.0
    %771 = vmatpush1.msra.mxu0 0.0
    %772 = vmatprep.subr.mxu0 0.0
    %773 = vmatpush1.msra.mxu0 0.0
    %774 = vmatprep.subr.mxu0 0.0
    %775 = vmatpush1.msra.mxu0 0.0
    %776 = vmatprep.subr.mxu0 0.0
    %777 = vmatpush1.msra.mxu0 0.0
    %778 = vmatprep.subr.mxu0 0.0
    %779 = vmatpush1.msra.mxu0 0.0
    %780 = vmatprep.subr.mxu0 0.0
    %781 = vmatpush1.msra.mxu0 0.0
    %782 = vmatprep.subr.mxu0 0.0
    %783 = vmatpush1.msra.mxu0 0.0
    %784 = vmatprep.subr.mxu0 0.0
    %785 = vmatpush1.msra.mxu0 0.0
    %786 = vmatprep.subr.mxu0 0.0
    %787 = vmatpush1.msra.mxu0 0.0
    %788 = vmatprep.subr.mxu0 0.0
    %789 = vmatpush1.msra.mxu0 0.0
    %790 = vmatprep.subr.mxu0 0.0
    %791 = vmatpush1.msra.mxu0 %v240
    %792 = vmatprep.subr.mxu0 0.0
    %793 = vmatpush1.msra.mxu0 %v239
    %794 = vmatprep.subr.mxu0 0.0
    %795 = vmatpush1.msra.mxu0 %v238
    %796 = vmatprep.subr.mxu0 0.0
    %797 = vmatpush1.msra.mxu0 %v237
    %798 = vmatprep.subr.mxu0 0.0
    %799 = vmatpush2.msra.mxu0 0.0
    %800 = vmatprep.subr.mxu0 0.0
    %801 = vmatpush2.msra.mxu0 0.0
    %802 = vmatprep.subr.mxu0 0.0
    %803 = vmatpush2.msra.mxu0 0.0
    %804 = vmatprep.subr.mxu0 0.0
    %805 = vmatpush2.msra.mxu0 0.0
    %806 = vmatprep.subr.mxu0 0.0
    %807 = vmatpush2.msra.mxu0 0.0
    %808 = vmatprep.subr.mxu0 0.0
    %809 = vmatpush2.msra.mxu0 0.0
    %810 = vmatprep.subr.mxu0 0.0
    %811 = vmatpush2.msra.mxu0 0.0
    %812 = vmatprep.subr.mxu0 0.0
    %813 = vmatpush2.msra.mxu0 0.0
    %814 = vmatprep.subr.mxu0 0.0
    %815 = vmatpush2.msra.mxu0 0.0
    %816 = vmatprep.subr.mxu0 0.0
    %817 = vmatpush2.msra.mxu0 0.0
    %818 = vmatprep.subr.mxu0 0.0
    %819 = vmatpush2.msra.mxu0 0.0
    %820 = vmatprep.subr.mxu0 0.0
    %821 = vmatpush2.msra.mxu0 0.0
    %822 = vmatprep.subr.mxu0 0.0
    %823 = vmatpush2.msra.mxu0 0.0
    %824 = vmatprep.subr.mxu0 0.0
    %825 = vmatpush2.msra.mxu0 0.0
    %826 = vmatprep.subr.mxu0 0.0
    %827 = vmatpush2.msra.mxu0 0.0
    %828 = vmatprep.subr.mxu0 0.0
    %829 = vmatpush2.msra.mxu0 0.0
    %830 = vmatprep.mubr.f32.mxu0 0.0
    %831 = vmatmul.mubr.f32.gmra.mxu0 %v764
    %v832 = vpop.f32.mrf.mxu0
    %v833 = vadd.f32 %v241, %v832
    %v834 = vpop.f32.mrf.mxu0
    %835 = vdwg.mxu0
    %v837 = vrot.slane %v833, 6
    %v839 = vadd.f32 %v234, %v837
    %v840 = vxor.u32 %v839, 2147483648
    %v841 = vmul.f32 %v840, 1.442695
    %v842 = vpow.pop %v841
    %v843 = vadd.f32 %v842, 1.0
    %v844 = vrcp.pop %v843
    %v845 = vmul.f32 1.0, %v844
    %846 = vrot.lane.b32.xlu0 %v837, 64
    %v847 = vpop.permute.xlu0 %846
    %v849 = vmul.f32 %v845, %v847
    %851 = vrot.lane.b32.xlu0 %v849, 64
    %v852 = vpop.permute.xlu0 %851
    %v854 = vadd.f32 %v234, %v852
    %v855 = vtanh.pop %v854
    %v856 = vsub.f32 1.0, %v845
    %858 = vrot.lane.b32.xlu0 %v855, 96
    %v859 = vpop.permute.xlu0 %858
    %v861 = vmul.f32 %v856, %v859
    %v862 = vrot.slane %v760, 6
    %v864 = vmul.f32 %v845, %v862
    %v865 = vadd.f32 %v861, %v864
    %v867 = vrot.slane %v865, 2
    %868 = vrot.lane.b32.xlu0 %v867, 96
    %v869 = vpop.permute.xlu0 %868
    %v870 = vsel %vm61, %v869, 0
    %872 = vmatprep.subr.mxu0 0.0
    %873 = vmatpush1.msra.mxu0 0.0
    %874 = vmatprep.subr.mxu0 0.0
    %875 = vmatpush1.msra.mxu0 0.0
    %876 = vmatprep.subr.mxu0 0.0
    %877 = vmatpush1.msra.mxu0 0.0
    %878 = vmatprep.subr.mxu0 0.0
    %879 = vmatpush1.msra.mxu0 0.0
    %880 = vmatprep.subr.mxu0 0.0
    %881 = vmatpush1.msra.mxu0 0.0
    %882 = vmatprep.subr.mxu0 0.0
    %883 = vmatpush1.msra.mxu0 0.0
    %884 = vmatprep.subr.mxu0 0.0
    %885 = vmatpush1.msra.mxu0 0.0
    %886 = vmatprep.subr.mxu0 0.0
    %887 = vmatpush1.msra.mxu0 0.0
    %888 = vmatprep.subr.mxu0 0.0
    %889 = vmatpush1.msra.mxu0 0.0
    %890 = vmatprep.subr.mxu0 0.0
    %891 = vmatpush1.msra.mxu0 0.0
    %892 = vmatprep.subr.mxu0 0.0
    %893 = vmatpush1.msra.mxu0 0.0
    %894 = vmatprep.subr.mxu0 0.0
    %895 = vmatpush1.msra.mxu0 0.0
    %896 = vmatprep.subr.mxu0 0.0
    %897 = vmatpush1.msra.mxu0 %v240
    %898 = vmatprep.subr.mxu0 0.0
    %899 = vmatpush1.msra.mxu0 %v239
    %900 = vmatprep.subr.mxu0 0.0
    %901 = vmatpush1.msra.mxu0 %v238
    %902 = vmatprep.subr.mxu0 0.0
    %903 = vmatpush1.msra.mxu0 %v237
    %904 = vmatprep.subr.mxu0 0.0
    %905 = vmatpush2.msra.mxu0 0.0
    %906 = vmatprep.subr.mxu0 0.0
    %907 = vmatpush2.msra.mxu0 0.0
    %908 = vmatprep.subr.mxu0 0.0
    %909 = vmatpush2.msra.mxu0 0.0
    %910 = vmatprep.subr.mxu0 0.0
    %911 = vmatpush2.msra.mxu0 0.0
    %912 = vmatprep.subr.mxu0 0.0
    %913 = vmatpush2.msra.mxu0 0.0
    %914 = vmatprep.subr.mxu0 0.0
    %915 = vmatpush2.msra.mxu0 0.0
    %916 = vmatprep.subr.mxu0 0.0
    %917 = vmatpush2.msra.mxu0 0.0
    %918 = vmatprep.subr.mxu0 0.0
    %919 = vmatpush2.msra.mxu0 0.0
    %920 = vmatprep.subr.mxu0 0.0
    %921 = vmatpush2.msra.mxu0 0.0
    %922 = vmatprep.subr.mxu0 0.0
    %923 = vmatpush2.msra.mxu0 0.0
    %924 = vmatprep.subr.mxu0 0.0
    %925 = vmatpush2.msra.mxu0 0.0
    %926 = vmatprep.subr.mxu0 0.0
    %927 = vmatpush2.msra.mxu0 0.0
    %928 = vmatprep.subr.mxu0 0.0
    %929 = vmatpush2.msra.mxu0 0.0
    %930 = vmatprep.subr.mxu0 0.0
    %931 = vmatpush2.msra.mxu0 0.0
    %932 = vmatprep.subr.mxu0 0.0
    %933 = vmatpush2.msra.mxu0 0.0
    %934 = vmatprep.subr.mxu0 0.0
    %935 = vmatpush2.msra.mxu0 0.0
    %936 = vmatprep.mubr.f32.mxu0 0.0
    %937 = vmatmul.mubr.f32.gmra.mxu0 %v870
    %v938 = vpop.f32.mrf.mxu0
    %v939 = vadd.f32 %v241, %v938
    %v940 = vpop.f32.mrf.mxu0
    %941 = vdwg.mxu0
    %v943 = vrot.slane %v939, 4
    %v945 = vadd.f32 %v234, %v943
    %v946 = vxor.u32 %v945, 2147483648
    %v947 = vmul.f32 %v946, 1.442695
    %v948 = vpow.pop %v947
    %v949 = vadd.f32 %v948, 1.0
    %v950 = vrcp.pop %v949
    %v951 = vmul.f32 1.0, %v950
    %952 = vrot.lane.b32.xlu0 %v943, 64
    %v953 = vpop.permute.xlu0 %952
    %v955 = vmul.f32 %v951, %v953
    %957 = vrot.lane.b32.xlu0 %v955, 64
    %v958 = vpop.permute.xlu0 %957
    %v960 = vadd.f32 %v234, %v958
    %v961 = vtanh.pop %v960
    %v962 = vsub.f32 1.0, %v951
    %964 = vrot.lane.b32.xlu0 %v961, 96
    %v965 = vpop.permute.xlu0 %964
    %v967 = vmul.f32 %v962, %v965
    %v968 = vrot.slane %v865, 6
    %v970 = vmul.f32 %v951, %v968
    %v971 = vadd.f32 %v967, %v970
    %v973 = vrot.slane %v971, 4
    %974 = vrot.lane.b32.xlu0 %v973, 96
    %v975 = vpop.permute.xlu0 %974
    %v976 = vsel %vm61, %v975, 0
    %978 = vmatprep.subr.mxu0 0.0
    %979 = vmatpush1.msra.mxu0 0.0
    %980 = vmatprep.subr.mxu0 0.0
    %981 = vmatpush1.msra.mxu0 0.0
    %982 = vmatprep.subr.mxu0 0.0
    %983 = vmatpush1.msra.mxu0 0.0
    %984 = vmatprep.subr.mxu0 0.0
    %985 = vmatpush1.msra.mxu0 0.0
    %986 = vmatprep.subr.mxu0 0.0
    %987 = vmatpush1.msra.mxu0 0.0
    %988 = vmatprep.subr.mxu0 0.0
    %989 = vmatpush1.msra.mxu0 0.0
    %990 = vmatprep.subr.mxu0 0.0
    %991 = vmatpush1.msra.mxu0 0.0
    %992 = vmatprep.subr.mxu0 0.0
    %993 = vmatpush1.msra.mxu0 0.0
    %994 = vmatprep.subr.mxu0 0.0
    %995 = vmatpush1.msra.mxu0 0.0
    %996 = vmatprep.subr.mxu0 0.0
    %997 = vmatpush1.msra.mxu0 0.0
    %998 = vmatprep.subr.mxu0 0.0
    %999 = vmatpush1.msra.mxu0 0.0
    %1000 = vmatprep.subr.mxu0 0.0
    %1001 = vmatpush1.msra.mxu0 0.0
    %1002 = vmatprep.subr.mxu0 0.0
    %1003 = vmatpush1.msra.mxu0 %v240
    %1004 = vmatprep.subr.mxu0 0.0
    %1005 = vmatpush1.msra.mxu0 %v239
    %1006 = vmatprep.subr.mxu0 0.0
    %1007 = vmatpush1.msra.mxu0 %v238
    %1008 = vmatprep.subr.mxu0 0.0
    %1009 = vmatpush1.msra.mxu0 %v237
    %1010 = vmatprep.subr.mxu0 0.0
    %1011 = vmatpush2.msra.mxu0 0.0
    %1012 = vmatprep.subr.mxu0 0.0
    %1013 = vmatpush2.msra.mxu0 0.0
    %1014 = vmatprep.subr.mxu0 0.0
    %1015 = vmatpush2.msra.mxu0 0.0
    %1016 = vmatprep.subr.mxu0 0.0
    %1017 = vmatpush2.msra.mxu0 0.0
    %1018 = vmatprep.subr.mxu0 0.0
    %1019 = vmatpush2.msra.mxu0 0.0
    %1020 = vmatprep.subr.mxu0 0.0
    %1021 = vmatpush2.msra.mxu0 0.0
    %1022 = vmatprep.subr.mxu0 0.0
    %1023 = vmatpush2.msra.mxu0 0.0
    %1024 = vmatprep.subr.mxu0 0.0
    %1025 = vmatpush2.msra.mxu0 0.0
    %1026 = vmatprep.subr.mxu0 0.0
    %1027 = vmatpush2.msra.mxu0 0.0
    %1028 = vmatprep.subr.mxu0 0.0
    %1029 = vmatpush2.msra.mxu0 0.0
    %1030 = vmatprep.subr.mxu0 0.0
    %1031 = vmatpush2.msra.mxu0 0.0
    %1032 = vmatprep.subr.mxu0 0.0
    %1033 = vmatpush2.msra.mxu0 0.0
    %1034 = vmatprep.subr.mxu0 0.0
    %1035 = vmatpush2.msra.mxu0 0.0
    %1036 = vmatprep.subr.mxu0 0.0
    %1037 = vmatpush2.msra.mxu0 0.0
    %1038 = vmatprep.subr.mxu0 0.0
    %1039 = vmatpush2.msra.mxu0 0.0
    %1040 = vmatprep.subr.mxu0 0.0
    %1041 = vmatpush2.msra.mxu0 0.0
    %1042 = vmatprep.mubr.f32.mxu0 0.0
    %1043 = vmatmul.mubr.f32.gmra.mxu0 %v976
    %v1044 = vpop.f32.mrf.mxu0
    %v1045 = vadd.f32 %v241, %v1044
    %v1046 = vpop.f32.mrf.mxu0
    %1047 = vdwg.mxu0
    %v1049 = vrot.slane %v1045, 2
    %v1051 = vadd.f32 %v234, %v1049
    %v1052 = vxor.u32 %v1051, 2147483648
    %v1053 = vmul.f32 %v1052, 1.442695
    %v1054 = vpow.pop %v1053
    %v1055 = vadd.f32 %v1054, 1.0
    %v1056 = vrcp.pop %v1055
    %v1057 = vmul.f32 1.0, %v1056
    %1058 = vrot.lane.b32.xlu0 %v1049, 64
    %v1059 = vpop.permute.xlu0 %1058
    %v1061 = vmul.f32 %v1057, %v1059
    %1063 = vrot.lane.b32.xlu0 %v1061, 64
    %v1064 = vpop.permute.xlu0 %1063
    %v1066 = vadd.f32 %v234, %v1064
    %v1067 = vtanh.pop %v1066
    %v1068 = vsub.f32 1.0, %v1057
    %1070 = vrot.lane.b32.xlu0 %v1067, 96
    %v1071 = vpop.permute.xlu0 %1070
    %v1073 = vmul.f32 %v1068, %v1071
    %v1074 = vrot.slane %v971, 6
    %v1076 = vmul.f32 %v1057, %v1074
    %v1077 = vadd.f32 %v1073, %v1076
    %v1078 = vld [vmem:[#allocation7 + $0x1d0] sm:$0xff]
    %v1079 = vld [vmem:[#allocation7 + $0x1e0] sm:$0xff]
    %v1080 = vld [vmem:[#allocation7 + $0x1f0] sm:$0xff]
    %v1081 = vld [vmem:[#allocation7 + $0x200] sm:$0xff]
    %v1082 = vld [vmem:[#allocation7 + $0x210] sm:$0xff]
    %v1083 = vld [vmem:[#allocation7 + $0x220] sm:$0xff]
    %v1084 = vld [vmem:[#allocation7 + $0x230] sm:$0xff]
    %v1085 = vld [vmem:[#allocation7 + $0x240] sm:$0xff]
    %v1086 = vld [vmem:[#allocation7 + $0x250] sm:$0xff]
    %v1087 = vld [vmem:[#allocation7 + $0x260] sm:$0xff]
    %v1088 = vld [vmem:[#allocation7 + $0x270] sm:$0xff]
    %v1089 = vld [vmem:[#allocation7 + $0x280] sm:$0xff]
    %v1090 = vld [vmem:[#allocation7 + $0x290] sm:$0xff]
    %v1091 = vld [vmem:[#allocation7 + $0x2a0] sm:$0xff]
    %v1092 = vld [vmem:[#allocation7 + $0x2b0] sm:$0xff]
    %v1093 = vld [vmem:[#allocation7 + $0x2c0] sm:$0xff]
    %v1094 = vld [vmem:[#allocation7 + $0x2d0] ss:$0 sm:$0xff]
    %v1095 = vld [vmem:[#allocation7 + $0x2e0] sm:$0xff]
    %v1096 = vld [vmem:[#allocation7 + $0x2e8] sm:$0xff]
    %v1097 = vld [vmem:[#allocation7 + $0x2f0] sm:$0xff]
    %v1098 = vld [vmem:[#allocation7 + $0x2f8] sm:$0xff]
    %v1099 = vld [vmem:[#allocation7 + $0x300] sm:$0xff]
    %v1100 = vld [vmem:[#allocation7 + $0x308] sm:$0xff]
    %v1101 = vld [vmem:[#allocation7 + $0x310] sm:$0xff]
    %v1102 = vld [vmem:[#allocation7 + $0x318] sm:$0xff]
    %v1103 = vld [vmem:[#allocation7 + $0x320] ss:$0 sm:$0xff]
    %v1104 = vld [vmem:[#allocation7 + $0x330] ss:$0 sm:$0xff]
    %v1105 = vld [vmem:[#allocation7 + $0x340] ss:$0 sm:$0xff]
    %v1107 = vrot.slane %v1077, 6
    %1108 = vrot.lane.b32.xlu0 %v1107, 96
    %v1109 = vpop.permute.xlu0 %1108
    %v1110 = vsel %vm61, %v1109, 0
    %1112 = vmatprep.subr.mxu0 0.0
    %1113 = vmatpush1.msra.mxu0 0.0
    %1114 = vmatprep.subr.mxu0 0.0
    %1115 = vmatpush1.msra.mxu0 0.0
    %1116 = vmatprep.subr.mxu0 0.0
    %1117 = vmatpush1.msra.mxu0 0.0
    %1118 = vmatprep.subr.mxu0 0.0
    %1119 = vmatpush1.msra.mxu0 0.0
    %1120 = vmatprep.subr.mxu0 0.0
    %1121 = vmatpush1.msra.mxu0 0.0
    %1122 = vmatprep.subr.mxu0 0.0
    %1123 = vmatpush1.msra.mxu0 0.0
    %1124 = vmatprep.subr.mxu0 0.0
    %1125 = vmatpush1.msra.mxu0 0.0
    %1126 = vmatprep.subr.mxu0 0.0
    %1127 = vmatpush1.msra.mxu0 0.0
    %1128 = vmatprep.subr.mxu0 0.0
    %1129 = vmatpush1.msra.mxu0 0.0
    %1130 = vmatprep.subr.mxu0 0.0
    %1131 = vmatpush1.msra.mxu0 0.0
    %1132 = vmatprep.subr.mxu0 0.0
    %1133 = vmatpush1.msra.mxu0 0.0
    %1134 = vmatprep.subr.mxu0 0.0
    %1135 = vmatpush1.msra.mxu0 0.0
    %1136 = vmatprep.subr.mxu0 0.0
    %1137 = vmatpush1.msra.mxu0 %v1102
    %1138 = vmatprep.subr.mxu0 0.0
    %1139 = vmatpush1.msra.mxu0 %v1100
    %1140 = vmatprep.subr.mxu0 0.0
    %1141 = vmatpush1.msra.mxu0 %v1098
    %1142 = vmatprep.subr.mxu0 0.0
    %1143 = vmatpush1.msra.mxu0 %v1096
    %1144 = vmatprep.subr.mxu0 0.0
    %1145 = vmatpush2.msra.mxu0 0.0
    %1146 = vmatprep.subr.mxu0 0.0
    %1147 = vmatpush2.msra.mxu0 0.0
    %1148 = vmatprep.subr.mxu0 0.0
    %1149 = vmatpush2.msra.mxu0 0.0
    %1150 = vmatprep.subr.mxu0 0.0
    %1151 = vmatpush2.msra.mxu0 0.0
    %1152 = vmatprep.subr.mxu0 0.0
    %1153 = vmatpush2.msra.mxu0 0.0
    %1154 = vmatprep.subr.mxu0 0.0
    %1155 = vmatpush2.msra.mxu0 0.0
    %1156 = vmatprep.subr.mxu0 0.0
    %1157 = vmatpush2.msra.mxu0 0.0
    %1158 = vmatprep.subr.mxu0 0.0
    %1159 = vmatpush2.msra.mxu0 0.0
    %1160 = vmatprep.subr.mxu0 0.0
    %1161 = vmatpush2.msra.mxu0 0.0
    %1162 = vmatprep.subr.mxu0 0.0
    %1163 = vmatpush2.msra.mxu0 0.0
    %1164 = vmatprep.subr.mxu0 0.0
    %1165 = vmatpush2.msra.mxu0 0.0
    %1166 = vmatprep.subr.mxu0 0.0
    %1167 = vmatpush2.msra.mxu0 0.0
    %1168 = vmatprep.subr.mxu0 0.0
    %1169 = vmatpush2.msra.mxu0 0.0
    %1170 = vmatprep.subr.mxu0 0.0
    %1171 = vmatpush2.msra.mxu0 0.0
    %1172 = vmatprep.subr.mxu0 0.0
    %1173 = vmatpush2.msra.mxu0 0.0
    %1174 = vmatprep.subr.mxu0 0.0
    %1175 = vmatpush2.msra.mxu0 0.0
    %1176 = vmatprep.mubr.f32.mxu0 0.0
    %1177 = vmatmul.mubr.f32.gmra.mxu0 %v1110
    %v1178 = vpop.f32.mrf.mxu0
    %v1179 = vadd.f32 %v1103, %v1178
    %v1180 = vpop.f32.mrf.mxu0
    %1181 = vdwg.mxu0
    %v1182 = vld [vmem:[#allocation5] sm:$0x3]
    %v1183 = vld [vmem:[#allocation7 + $0x1b0] sm:$0xff]
    %v1184 = vld [vmem:[#allocation7 + $0x1c0] ss:$0 sm:$0xff]
    %vm1185 = vcmask 64512
    %v1187 = vsel %vm1185, %v1182, 0
    %1189 = vmatprep.subr.mxu0 0.0
    %1190 = vmatpush1.msra.mxu0 0.0
    %1191 = vmatprep.subr.mxu0 0.0
    %1192 = vmatpush1.msra.mxu0 0.0
    %1193 = vmatprep.subr.mxu0 0.0
    %1194 = vmatpush1.msra.mxu0 0.0
    %1195 = vmatprep.subr.mxu0 0.0
    %1196 = vmatpush1.msra.mxu0 0.0
    %1197 = vmatprep.subr.mxu0 0.0
    %1198 = vmatpush1.msra.mxu0 0.0
    %1199 = vmatprep.subr.mxu0 0.0
    %1200 = vmatpush1.msra.mxu0 0.0
    %1201 = vmatprep.subr.mxu0 0.0
    %1202 = vmatpush1.msra.mxu0 0.0
    %1203 = vmatprep.subr.mxu0 0.0
    %1204 = vmatpush1.msra.mxu0 0.0
    %1205 = vmatprep.subr.mxu0 0.0
    %1206 = vmatpush1.msra.mxu0 0.0
    %1207 = vmatprep.subr.mxu0 0.0
    %1208 = vmatpush1.msra.mxu0 0.0
    %1209 = vmatprep.subr.mxu0 0.0
    %1210 = vmatpush1.msra.mxu0 0.0
    %1211 = vmatprep.subr.mxu0 0.0
    %1212 = vmatpush1.msra.mxu0 0.0
    %1213 = vmatprep.subr.mxu0 0.0
    %1214 = vmatpush1.msra.mxu0 0.0
    %1215 = vmatprep.subr.mxu0 0.0
    %1216 = vmatpush1.msra.mxu0 0.0
    %1217 = vmatprep.subr.mxu0 0.0
    %1218 = vmatpush1.msra.mxu0 0.0
    %1219 = vmatprep.subr.mxu0 0.0
    %1220 = vmatpush1.msra.mxu0 %v1183
    %1221 = vmatprep.subr.mxu0 0.0
    %1222 = vmatpush2.msra.mxu0 0.0
    %1223 = vmatprep.subr.mxu0 0.0
    %1224 = vmatpush2.msra.mxu0 0.0
    %1225 = vmatprep.subr.mxu0 0.0
    %1226 = vmatpush2.msra.mxu0 0.0
    %1227 = vmatprep.subr.mxu0 0.0
    %1228 = vmatpush2.msra.mxu0 0.0
    %1229 = vmatprep.subr.mxu0 0.0
    %1230 = vmatpush2.msra.mxu0 0.0
    %1231 = vmatprep.subr.mxu0 0.0
    %1232 = vmatpush2.msra.mxu0 0.0
    %1233 = vmatprep.subr.mxu0 0.0
    %1234 = vmatpush2.msra.mxu0 0.0
    %1235 = vmatprep.subr.mxu0 0.0
    %1236 = vmatpush2.msra.mxu0 0.0
    %1237 = vmatprep.subr.mxu0 0.0
    %1238 = vmatpush2.msra.mxu0 0.0
    %1239 = vmatprep.subr.mxu0 0.0
    %1240 = vmatpush2.msra.mxu0 0.0
    %1241 = vmatprep.subr.mxu0 0.0
    %1242 = vmatpush2.msra.mxu0 0.0
    %1243 = vmatprep.subr.mxu0 0.0
    %1244 = vmatpush2.msra.mxu0 0.0
    %1245 = vmatprep.subr.mxu0 0.0
    %1246 = vmatpush2.msra.mxu0 0.0
    %1247 = vmatprep.subr.mxu0 0.0
    %1248 = vmatpush2.msra.mxu0 0.0
    %1249 = vmatprep.subr.mxu0 0.0
    %1250 = vmatpush2.msra.mxu0 0.0
    %1251 = vmatprep.subr.mxu0 0.0
    %1252 = vmatpush2.msra.mxu0 0.0
    %1253 = vmatprep.mubr.f32.mxu0 0.0
    %1254 = vmatmul.mubr.f32.gmra.mxu0 %v1187
    %v1255 = vpop.f32.mrf.mxu0
    %v1256 = vadd.f32 %v1184, %v1255
    %v1257 = vpop.f32.mrf.mxu0
    %1258 = vdwg.mxu0
    %v1259 = vmax.f32 %v1256, 0.0
    %1260 = vmatprep.subr.mxu0 0.0
    %1261 = vmatpush1.msra.mxu0 %v1093
    %1262 = vmatprep.subr.mxu0 0.0
    %1263 = vmatpush1.msra.mxu0 %v1092
    %1264 = vmatprep.subr.mxu0 0.0
    %1265 = vmatpush1.msra.mxu0 %v1091
    %1266 = vmatprep.subr.mxu0 0.0
    %1267 = vmatpush1.msra.mxu0 %v1090
    %1268 = vmatprep.subr.mxu0 0.0
    %1269 = vmatpush1.msra.mxu0 %v1089
    %1270 = vmatprep.subr.mxu0 0.0
    %1271 = vmatpush1.msra.mxu0 %v1088
    %1272 = vmatprep.subr.mxu0 0.0
    %1273 = vmatpush1.msra.mxu0 %v1087
    %1274 = vmatprep.subr.mxu0 0.0
    %1275 = vmatpush1.msra.mxu0 %v1086
    %1276 = vmatprep.subr.mxu0 0.0
    %1277 = vmatpush1.msra.mxu0 %v1085
    %1278 = vmatprep.subr.mxu0 0.0
    %1279 = vmatpush1.msra.mxu0 %v1084
    %1280 = vmatprep.subr.mxu0 0.0
    %1281 = vmatpush1.msra.mxu0 %v1083
    %1282 = vmatprep.subr.mxu0 0.0
    %1283 = vmatpush1.msra.mxu0 %v1082
    %1284 = vmatprep.subr.mxu0 0.0
    %1285 = vmatpush1.msra.mxu0 %v1081
    %1286 = vmatprep.subr.mxu0 0.0
    %1287 = vmatpush1.msra.mxu0 %v1080
    %1288 = vmatprep.subr.mxu0 0.0
    %1289 = vmatpush1.msra.mxu0 %v1079
    %1290 = vmatprep.subr.mxu0 0.0
    %1291 = vmatpush1.msra.mxu0 %v1078
    %1292 = vmatprep.subr.mxu0 0.0
    %1293 = vmatpush2.msra.mxu0 0.0
    %1294 = vmatprep.subr.mxu0 0.0
    %1295 = vmatpush2.msra.mxu0 0.0
    %1296 = vmatprep.subr.mxu0 0.0
    %1297 = vmatpush2.msra.mxu0 0.0
    %1298 = vmatprep.subr.mxu0 0.0
    %1299 = vmatpush2.msra.mxu0 0.0
    %1300 = vmatprep.subr.mxu0 0.0
    %1301 = vmatpush2.msra.mxu0 0.0
    %1302 = vmatprep.subr.mxu0 0.0
    %1303 = vmatpush2.msra.mxu0 0.0
    %1304 = vmatprep.subr.mxu0 0.0
    %1305 = vmatpush2.msra.mxu0 0.0
    %1306 = vmatprep.subr.mxu0 0.0
    %1307 = vmatpush2.msra.mxu0 0.0
    %1308 = vmatprep.subr.mxu0 0.0
    %1309 = vmatpush2.msra.mxu0 0.0
    %1310 = vmatprep.subr.mxu0 0.0
    %1311 = vmatpush2.msra.mxu0 0.0
    %1312 = vmatprep.subr.mxu0 0.0
    %1313 = vmatpush2.msra.mxu0 0.0
    %1314 = vmatprep.subr.mxu0 0.0
    %1315 = vmatpush2.msra.mxu0 0.0
    %1316 = vmatprep.subr.mxu0 0.0
    %1317 = vmatpush2.msra.mxu0 0.0
    %1318 = vmatprep.subr.mxu0 0.0
    %1319 = vmatpush2.msra.mxu0 0.0
    %1320 = vmatprep.subr.mxu0 0.0
    %1321 = vmatpush2.msra.mxu0 0.0
    %1322 = vmatprep.subr.mxu0 0.0
    %1323 = vmatpush2.msra.mxu0 0.0
    %1324 = vmatprep.mubr.f32.mxu0 0.0
    %1325 = vmatmul.mubr.f32.gmra.mxu0 %v1259
    %v1326 = vpop.f32.mrf.mxu0
    %v1327 = vadd.f32 %v1094, %v1326
    %v1328 = vpop.f32.mrf.mxu0
    %1329 = vdwg.mxu0
    %v1330 = vadd.f32 %v1327, %v1179
    %v1331 = vxor.u32 %v1330, 2147483648
    %v1332 = vmul.f32 %v1331, 1.442695
    %v1333 = vpow.pop %v1332
    %v1334 = vadd.f32 %v1333, 1.0
    %v1335 = vrcp.pop %v1334
    %v1336 = vmul.f32 1.0, %v1335
    %1338 = vrot.lane.b32.xlu0 %v1179, 64
    %v1339 = vpop.permute.xlu0 %1338
    %v1341 = vmul.f32 %v1336, %v1339
    %1343 = vrot.lane.b32.xlu0 %v1341, 64
    %v1344 = vpop.permute.xlu0 %1343
    %v1346 = vadd.f32 %v1327, %v1344
    %v1347 = vtanh.pop %v1346
    %v1348 = vsub.f32 1.0, %v1336
    %1350 = vrot.lane.b32.xlu0 %v1347, 96
    %v1351 = vpop.permute.xlu0 %1350
    %v1353 = vmul.f32 %v1348, %v1351
    %v1355 = vmul.f32 %v1336, %v1107
    %v1356 = vadd.f32 %v1353, %v1355
    %1358 = vrot.lane.b32.xlu0 %v1356, 96
    %v1359 = vpop.permute.xlu0 %1358
    %v1360 = vsel %vm61, %v1359, 0
    %1362 = vmatprep.subr.mxu0 0.0
    %1363 = vmatpush1.msra.mxu0 0.0
    %1364 = vmatprep.subr.mxu0 0.0
    %1365 = vmatpush1.msra.mxu0 0.0
    %1366 = vmatprep.subr.mxu0 0.0
    %1367 = vmatpush1.msra.mxu0 0.0
    %1368 = vmatprep.subr.mxu0 0.0
    %1369 = vmatpush1.msra.mxu0 0.0
    %1370 = vmatprep.subr.mxu0 0.0
    %1371 = vmatpush1.msra.mxu0 0.0
    %1372 = vmatprep.subr.mxu0 0.0
    %1373 = vmatpush1.msra.mxu0 0.0
    %1374 = vmatprep.subr.mxu0 0.0
    %1375 = vmatpush1.msra.mxu0 0.0
    %1376 = vmatprep.subr.mxu0 0.0
    %1377 = vmatpush1.msra.mxu0 0.0
    %1378 = vmatprep.subr.mxu0 0.0
    %1379 = vmatpush1.msra.mxu0 0.0
    %1380 = vmatprep.subr.mxu0 0.0
    %1381 = vmatpush1.msra.mxu0 0.0
    %1382 = vmatprep.subr.mxu0 0.0
    %1383 = vmatpush1.msra.mxu0 0.0
    %1384 = vmatprep.subr.mxu0 0.0
    %1385 = vmatpush1.msra.mxu0 0.0
    %1386 = vmatprep.subr.mxu0 %v1102
    %1387 = vmatpush1.msra.mxu0 %v1101
    %1388 = vmatprep.subr.mxu0 %v1100
    %1389 = vmatpush1.msra.mxu0 %v1099
    %1390 = vmatprep.subr.mxu0 %v1098
    %1391 = vmatpush1.msra.mxu0 %v1097
    %1392 = vmatprep.subr.mxu0 %v1096
    %1393 = vmatpush1.msra.mxu0 %v1095
    %1394 = vmatprep.subr.mxu0 0.0
    %1395 = vmatpush2.msra.mxu0 0.0
    %1396 = vmatprep.subr.mxu0 0.0
    %1397 = vmatpush2.msra.mxu0 0.0
    %1398 = vmatprep.subr.mxu0 0.0
    %1399 = vmatpush2.msra.mxu0 0.0
    %1400 = vmatprep.subr.mxu0 0.0
    %1401 = vmatpush2.msra.mxu0 0.0
    %1402 = vmatprep.subr.mxu0 0.0
    %1403 = vmatpush2.msra.mxu0 0.0
    %1404 = vmatprep.subr.mxu0 0.0
    %1405 = vmatpush2.msra.mxu0 0.0
    %1406 = vmatprep.subr.mxu0 0.0
    %1407 = vmatpush2.msra.mxu0 0.0
    %1408 = vmatprep.subr.mxu0 0.0
    %1409 = vmatpush2.msra.mxu0 0.0
    %1410 = vmatprep.subr.mxu0 0.0
    %1411 = vmatpush2.msra.mxu0 0.0
    %1412 = vmatprep.subr.mxu0 0.0
    %1413 = vmatpush2.msra.mxu0 0.0
    %1414 = vmatprep.subr.mxu0 0.0
    %1415 = vmatpush2.msra.mxu0 0.0
    %1416 = vmatprep.subr.mxu0 0.0
    %1417 = vmatpush2.msra.mxu0 0.0
    %1418 = vmatprep.subr.mxu0 0.0
    %1419 = vmatpush2.msra.mxu0 0.0
    %1420 = vmatprep.subr.mxu0 0.0
    %1421 = vmatpush2.msra.mxu0 0.0
    %1422 = vmatprep.subr.mxu0 0.0
    %1423 = vmatpush2.msra.mxu0 0.0
    %1424 = vmatprep.subr.mxu0 0.0
    %1425 = vmatpush2.msra.mxu0 0.0
    %1426 = vmatprep.mubr.f32.mxu0 0.0
    %1427 = vmatmul.mubr.f32.gmra.mxu0 %v1360
    %v1428 = vpop.f32.mrf.mxu0
    %v1429 = vadd.f32 0.0, %v1428
    %v1430 = vpop.f32.mrf.mxu0
    %v1431 = vadd.f32 0.0, %v1430
    %1432 = vdwg.mxu0
    %v1433 = vadd.f32 %v1429, %v1105
    %v1434 = vadd.f32 %v1431, %v1103
    %1436 = vrot.lane.b32.xlu0 %v1104, 96
    %v1437 = vpop.permute.xlu0 %1436
    %v1439 = vadd.f32 %v1431, %v1437
    %v1440 = vmax.f32 %v1433, 0.0
    %1441 = vmatprep.subr.mxu0 0.0
    %1442 = vmatpush1.msra.mxu0 %v1093
    %1443 = vmatprep.subr.mxu0 0.0
    %1444 = vmatpush1.msra.mxu0 %v1092
    %1445 = vmatprep.subr.mxu0 0.0
    %1446 = vmatpush1.msra.mxu0 %v1091
    %1447 = vmatprep.subr.mxu0 0.0
    %1448 = vmatpush1.msra.mxu0 %v1090
    %1449 = vmatprep.subr.mxu0 0.0
    %1450 = vmatpush1.msra.mxu0 %v1089
    %1451 = vmatprep.subr.mxu0 0.0
    %1452 = vmatpush1.msra.mxu0 %v1088
    %1453 = vmatprep.subr.mxu0 0.0
    %1454 = vmatpush1.msra.mxu0 %v1087
    %1455 = vmatprep.subr.mxu0 0.0
    %1456 = vmatpush1.msra.mxu0 %v1086
    %1457 = vmatprep.subr.mxu0 0.0
    %1458 = vmatpush1.msra.mxu0 %v1085
    %1459 = vmatprep.subr.mxu0 0.0
    %1460 = vmatpush1.msra.mxu0 %v1084
    %1461 = vmatprep.subr.mxu0 0.0
    %1462 = vmatpush1.msra.mxu0 %v1083
    %1463 = vmatprep.subr.mxu0 0.0
    %1464 = vmatpush1.msra.mxu0 %v1082
    %1465 = vmatprep.subr.mxu0 0.0
    %1466 = vmatpush1.msra.mxu0 %v1081
    %1467 = vmatprep.subr.mxu0 0.0
    %1468 = vmatpush1.msra.mxu0 %v1080
    %1469 = vmatprep.subr.mxu0 0.0
    %1470 = vmatpush1.msra.mxu0 %v1079
    %1471 = vmatprep.subr.mxu0 0.0
    %1472 = vmatpush1.msra.mxu0 %v1078
    %1473 = vmatprep.subr.mxu0 0.0
    %1474 = vmatpush2.msra.mxu0 0.0
    %1475 = vmatprep.subr.mxu0 0.0
    %1476 = vmatpush2.msra.mxu0 0.0
    %1477 = vmatprep.subr.mxu0 0.0
    %1478 = vmatpush2.msra.mxu0 0.0
    %1479 = vmatprep.subr.mxu0 0.0
    %1480 = vmatpush2.msra.mxu0 0.0
    %1481 = vmatprep.subr.mxu0 0.0
    %1482 = vmatpush2.msra.mxu0 0.0
    %1483 = vmatprep.subr.mxu0 0.0
    %1484 = vmatpush2.msra.mxu0 0.0
    %1485 = vmatprep.subr.mxu0 0.0
    %1486 = vmatpush2.msra.mxu0 0.0
    %1487 = vmatprep.subr.mxu0 0.0
    %1488 = vmatpush2.msra.mxu0 0.0
    %1489 = vmatprep.subr.mxu0 0.0
    %1490 = vmatpush2.msra.mxu0 0.0
    %1491 = vmatprep.subr.mxu0 0.0
    %1492 = vmatpush2.msra.mxu0 0.0
    %1493 = vmatprep.subr.mxu0 0.0
    %1494 = vmatpush2.msra.mxu0 0.0
    %1495 = vmatprep.subr.mxu0 0.0
    %1496 = vmatpush2.msra.mxu0 0.0
    %1497 = vmatprep.subr.mxu0 0.0
    %1498 = vmatpush2.msra.mxu0 0.0
    %1499 = vmatprep.subr.mxu0 0.0
    %1500 = vmatpush2.msra.mxu0 0.0
    %1501 = vmatprep.subr.mxu0 0.0
    %1502 = vmatpush2.msra.mxu0 0.0
    %1503 = vmatprep.subr.mxu0 0.0
    %1504 = vmatpush2.msra.mxu0 0.0
    %1505 = vmatprep.mubr.f32.mxu0 0.0
    %1506 = vmatmul.mubr.f32.gmra.mxu0 %v1440
    %v1507 = vpop.f32.mrf.mxu0
    %v1508 = vadd.f32 %v1094, %v1507
    %v1509 = vpop.f32.mrf.mxu0
    %1510 = vdwg.mxu0
    %v1511 = vadd.f32 %v1508, %v1434
    %v1512 = vxor.u32 %v1511, 2147483648
    %v1513 = vmul.f32 %v1512, 1.442695
    %v1514 = vpow.pop %v1513
    %v1515 = vadd.f32 %v1514, 1.0
    %v1516 = vrcp.pop %v1515
    %v1517 = vmul.f32 1.0, %v1516
    %1519 = vrot.lane.b32.xlu0 %v1434, 64
    %v1520 = vpop.permute.xlu0 %1519
    %v1522 = vmul.f32 %v1517, %v1520
    %1524 = vrot.lane.b32.xlu0 %v1522, 64
    %v1525 = vpop.permute.xlu0 %1524
    %v1527 = vadd.f32 %v1508, %v1525
    %v1528 = vtanh.pop %v1527
    %v1529 = vsub.f32 1.0, %v1517
    %1531 = vrot.lane.b32.xlu0 %v1528, 96
    %v1532 = vpop.permute.xlu0 %1531
    %v1534 = vmul.f32 %v1529, %v1532
    %v1535 = vmul.f32 %v1517, %v1356
    %v1536 = vadd.f32 %v1534, %v1535
    %1538 = vrot.lane.b32.xlu0 %v1536, 96
    %v1539 = vpop.permute.xlu0 %1538
    %v1540 = vsel %vm61, %v1539, 0
    %1542 = vmatprep.subr.mxu0 0.0
    %1543 = vmatpush1.msra.mxu0 0.0
    %1544 = vmatprep.subr.mxu0 0.0
    %1545 = vmatpush1.msra.mxu0 0.0
    %1546 = vmatprep.subr.mxu0 0.0
    %1547 = vmatpush1.msra.mxu0 0.0
    %1548 = vmatprep.subr.mxu0 0.0
    %1549 = vmatpush1.msra.mxu0 0.0
    %1550 = vmatprep.subr.mxu0 0.0
    %1551 = vmatpush1.msra.mxu0 0.0
    %1552 = vmatprep.subr.mxu0 0.0
    %1553 = vmatpush1.msra.mxu0 0.0
    %1554 = vmatprep.subr.mxu0 0.0
    %1555 = vmatpush1.msra.mxu0 0.0
    %1556 = vmatprep.subr.mxu0 0.0
    %1557 = vmatpush1.msra.mxu0 0.0
    %1558 = vmatprep.subr.mxu0 0.0
    %1559 = vmatpush1.msra.mxu0 0.0
    %1560 = vmatprep.subr.mxu0 0.0
    %1561 = vmatpush1.msra.mxu0 0.0
    %1562 = vmatprep.subr.mxu0 0.0
    %1563 = vmatpush1.msra.mxu0 0.0
    %1564 = vmatprep.subr.mxu0 0.0
    %1565 = vmatpush1.msra.mxu0 0.0
    %1566 = vmatprep.subr.mxu0 %v1102
    %1567 = vmatpush1.msra.mxu0 %v1101
    %1568 = vmatprep.subr.mxu0 %v1100
    %1569 = vmatpush1.msra.mxu0 %v1099
    %1570 = vmatprep.subr.mxu0 %v1098
    %1571 = vmatpush1.msra.mxu0 %v1097
    %1572 = vmatprep.subr.mxu0 %v1096
    %1573 = vmatpush1.msra.mxu0 %v1095
    %1574 = vmatprep.subr.mxu0 0.0
    %1575 = vmatpush2.msra.mxu0 0.0
    %1576 = vmatprep.subr.mxu0 0.0
    %1577 = vmatpush2.msra.mxu0 0.0
    %1578 = vmatprep.subr.mxu0 0.0
    %1579 = vmatpush2.msra.mxu0 0.0
    %1580 = vmatprep.subr.mxu0 0.0
    %1581 = vmatpush2.msra.mxu0 0.0
    %1582 = vmatprep.subr.mxu0 0.0
    %1583 = vmatpush2.msra.mxu0 0.0
    %1584 = vmatprep.subr.mxu0 0.0
    %1585 = vmatpush2.msra.mxu0 0.0
    %1586 = vmatprep.subr.mxu0 0.0
    %1587 = vmatpush2.msra.mxu0 0.0
    %1588 = vmatprep.subr.mxu0 0.0
    %1589 = vmatpush2.msra.mxu0 0.0
    %1590 = vmatprep.subr.mxu0 0.0
    %1591 = vmatpush2.msra.mxu0 0.0
    %1592 = vmatprep.subr.mxu0 0.0
    %1593 = vmatpush2.msra.mxu0 0.0
    %1594 = vmatprep.subr.mxu0 0.0
    %1595 = vmatpush2.msra.mxu0 0.0
    %1596 = vmatprep.subr.mxu0 0.0
    %1597 = vmatpush2.msra.mxu0 0.0
    %1598 = vmatprep.subr.mxu0 0.0
    %1599 = vmatpush2.msra.mxu0 0.0
    %1600 = vmatprep.subr.mxu0 0.0
    %1601 = vmatpush2.msra.mxu0 0.0
    %1602 = vmatprep.subr.mxu0 0.0
    %1603 = vmatpush2.msra.mxu0 0.0
    %1604 = vmatprep.subr.mxu0 0.0
    %1605 = vmatpush2.msra.mxu0 0.0
    %1606 = vmatprep.mubr.f32.mxu0 0.0
    %1607 = vmatmul.mubr.f32.gmra.mxu0 %v1540
    %v1608 = vpop.f32.mrf.mxu0
    %v1609 = vadd.f32 0.0, %v1608
    %v1610 = vpop.f32.mrf.mxu0
    %v1611 = vadd.f32 0.0, %v1610
    %1612 = vdwg.mxu0
    %v1613 = vadd.f32 %v1609, %v1105
    %v1614 = vadd.f32 %v1611, %v1103
    %v1615 = vadd.f32 %v1611, %v1437
    %v1616 = vmax.f32 %v1613, 0.0
    %1617 = vmatprep.subr.mxu0 0.0
    %1618 = vmatpush1.msra.mxu0 %v1093
    %1619 = vmatprep.subr.mxu0 0.0
    %1620 = vmatpush1.msra.mxu0 %v1092
    %1621 = vmatprep.subr.mxu0 0.0
    %1622 = vmatpush1.msra.mxu0 %v1091
    %1623 = vmatprep.subr.mxu0 0.0
    %1624 = vmatpush1.msra.mxu0 %v1090
    %1625 = vmatprep.subr.mxu0 0.0
    %1626 = vmatpush1.msra.mxu0 %v1089
    %1627 = vmatprep.subr.mxu0 0.0
    %1628 = vmatpush1.msra.mxu0 %v1088
    %1629 = vmatprep.subr.mxu0 0.0
    %1630 = vmatpush1.msra.mxu0 %v1087
    %1631 = vmatprep.subr.mxu0 0.0
    %1632 = vmatpush1.msra.mxu0 %v1086
    %1633 = vmatprep.subr.mxu0 0.0
    %1634 = vmatpush1.msra.mxu0 %v1085
    %1635 = vmatprep.subr.mxu0 0.0
    %1636 = vmatpush1.msra.mxu0 %v1084
    %1637 = vmatprep.subr.mxu0 0.0
    %1638 = vmatpush1.msra.mxu0 %v1083
    %1639 = vmatprep.subr.mxu0 0.0
    %1640 = vmatpush1.msra.mxu0 %v1082
    %1641 = vmatprep.subr.mxu0 0.0
    %1642 = vmatpush1.msra.mxu0 %v1081
    %1643 = vmatprep.subr.mxu0 0.0
    %1644 = vmatpush1.msra.mxu0 %v1080
    %1645 = vmatprep.subr.mxu0 0.0
    %1646 = vmatpush1.msra.mxu0 %v1079
    %1647 = vmatprep.subr.mxu0 0.0
    %1648 = vmatpush1.msra.mxu0 %v1078
    %1649 = vmatprep.subr.mxu0 0.0
    %1650 = vmatpush2.msra.mxu0 0.0
    %1651 = vmatprep.subr.mxu0 0.0
    %1652 = vmatpush2.msra.mxu0 0.0
    %1653 = vmatprep.subr.mxu0 0.0
    %1654 = vmatpush2.msra.mxu0 0.0
    %1655 = vmatprep.subr.mxu0 0.0
    %1656 = vmatpush2.msra.mxu0 0.0
    %1657 = vmatprep.subr.mxu0 0.0
    %1658 = vmatpush2.msra.mxu0 0.0
    %1659 = vmatprep.subr.mxu0 0.0
    %1660 = vmatpush2.msra.mxu0 0.0
    %1661 = vmatprep.subr.mxu0 0.0
    %1662 = vmatpush2.msra.mxu0 0.0
    %1663 = vmatprep.subr.mxu0 0.0
    %1664 = vmatpush2.msra.mxu0 0.0
    %1665 = vmatprep.subr.mxu0 0.0
    %1666 = vmatpush2.msra.mxu0 0.0
    %1667 = vmatprep.subr.mxu0 0.0
    %1668 = vmatpush2.msra.mxu0 0.0
    %1669 = vmatprep.subr.mxu0 0.0
    %1670 = vmatpush2.msra.mxu0 0.0
    %1671 = vmatprep.subr.mxu0 0.0
    %1672 = vmatpush2.msra.mxu0 0.0
    %1673 = vmatprep.subr.mxu0 0.0
    %1674 = vmatpush2.msra.mxu0 0.0
    %1675 = vmatprep.subr.mxu0 0.0
    %1676 = vmatpush2.msra.mxu0 0.0
    %1677 = vmatprep.subr.mxu0 0.0
    %1678 = vmatpush2.msra.mxu0 0.0
    %1679 = vmatprep.subr.mxu0 0.0
    %1680 = vmatpush2.msra.mxu0 0.0
    %1681 = vmatprep.mubr.f32.mxu0 0.0
    %1682 = vmatmul.mubr.f32.gmra.mxu0 %v1616
    %v1683 = vpop.f32.mrf.mxu0
    %v1684 = vadd.f32 %v1094, %v1683
    %v1685 = vpop.f32.mrf.mxu0
    %1686 = vdwg.mxu0
    %v1687 = vadd.f32 %v1684, %v1614
    %v1688 = vxor.u32 %v1687, 2147483648
    %v1689 = vmul.f32 %v1688, 1.442695
    %v1690 = vpow.pop %v1689
    %v1691 = vadd.f32 %v1690, 1.0
    %v1692 = vrcp.pop %v1691
    %v1693 = vmul.f32 1.0, %v1692
    %1695 = vrot.lane.b32.xlu0 %v1614, 64
    %v1696 = vpop.permute.xlu0 %1695
    %v1698 = vmul.f32 %v1693, %v1696
    %1700 = vrot.lane.b32.xlu0 %v1698, 64
    %v1701 = vpop.permute.xlu0 %1700
    %v1703 = vadd.f32 %v1684, %v1701
    %v1704 = vtanh.pop %v1703
    %v1705 = vsub.f32 1.0, %v1693
    %1707 = vrot.lane.b32.xlu0 %v1704, 96
    %v1708 = vpop.permute.xlu0 %1707
    %v1710 = vmul.f32 %v1705, %v1708
    %v1711 = vmul.f32 %v1693, %v1536
    %v1712 = vadd.f32 %v1710, %v1711
    %1714 = vrot.lane.b32.xlu0 %v1712, 96
    %v1715 = vpop.permute.xlu0 %1714
    %v1716 = vsel %vm61, %v1715, 0
    %1718 = vmatprep.subr.mxu0 0.0
    %1719 = vmatpush1.msra.mxu0 0.0
    %1720 = vmatprep.subr.mxu0 0.0
    %1721 = vmatpush1.msra.mxu0 0.0
    %1722 = vmatprep.subr.mxu0 0.0
    %1723 = vmatpush1.msra.mxu0 0.0
    %1724 = vmatprep.subr.mxu0 0.0
    %1725 = vmatpush1.msra.mxu0 0.0
    %1726 = vmatprep.subr.mxu0 0.0
    %1727 = vmatpush1.msra.mxu0 0.0
    %1728 = vmatprep.subr.mxu0 0.0
    %1729 = vmatpush1.msra.mxu0 0.0
    %1730 = vmatprep.subr.mxu0 0.0
    %1731 = vmatpush1.msra.mxu0 0.0
    %1732 = vmatprep.subr.mxu0 0.0
    %1733 = vmatpush1.msra.mxu0 0.0
    %1734 = vmatprep.subr.mxu0 0.0
    %1735 = vmatpush1.msra.mxu0 0.0
    %1736 = vmatprep.subr.mxu0 0.0
    %1737 = vmatpush1.msra.mxu0 0.0
    %1738 = vmatprep.subr.mxu0 0.0
    %1739 = vmatpush1.msra.mxu0 0.0
    %1740 = vmatprep.subr.mxu0 0.0
    %1741 = vmatpush1.msra.mxu0 0.0
    %1742 = vmatprep.subr.mxu0 %v1102
    %1743 = vmatpush1.msra.mxu0 %v1101
    %1744 = vmatprep.subr.mxu0 %v1100
    %1745 = vmatpush1.msra.mxu0 %v1099
    %1746 = vmatprep.subr.mxu0 %v1098
    %1747 = vmatpush1.msra.mxu0 %v1097
    %1748 = vmatprep.subr.mxu0 %v1096
    %1749 = vmatpush1.msra.mxu0 %v1095
    %1750 = vmatprep.subr.mxu0 0.0
    %1751 = vmatpush2.msra.mxu0 0.0
    %1752 = vmatprep.subr.mxu0 0.0
    %1753 = vmatpush2.msra.mxu0 0.0
    %1754 = vmatprep.subr.mxu0 0.0
    %1755 = vmatpush2.msra.mxu0 0.0
    %1756 = vmatprep.subr.mxu0 0.0
    %1757 = vmatpush2.msra.mxu0 0.0
    %1758 = vmatprep.subr.mxu0 0.0
    %1759 = vmatpush2.msra.mxu0 0.0
    %1760 = vmatprep.subr.mxu0 0.0
    %1761 = vmatpush2.msra.mxu0 0.0
    %1762 = vmatprep.subr.mxu0 0.0
    %1763 = vmatpush2.msra.mxu0 0.0
    %1764 = vmatprep.subr.mxu0 0.0
    %1765 = vmatpush2.msra.mxu0 0.0
    %1766 = vmatprep.subr.mxu0 0.0
    %1767 = vmatpush2.msra.mxu0 0.0
    %1768 = vmatprep.subr.mxu0 0.0
    %1769 = vmatpush2.msra.mxu0 0.0
    %1770 = vmatprep.subr.mxu0 0.0
    %1771 = vmatpush2.msra.mxu0 0.0
    %1772 = vmatprep.subr.mxu0 0.0
    %1773 = vmatpush2.msra.mxu0 0.0
    %1774 = vmatprep.subr.mxu0 0.0
    %1775 = vmatpush2.msra.mxu0 0.0
    %1776 = vmatprep.subr.mxu0 0.0
    %1777 = vmatpush2.msra.mxu0 0.0
    %1778 = vmatprep.subr.mxu0 0.0
    %1779 = vmatpush2.msra.mxu0 0.0
    %1780 = vmatprep.subr.mxu0 0.0
    %1781 = vmatpush2.msra.mxu0 0.0
    %1782 = vmatprep.mubr.f32.mxu0 0.0
    %1783 = vmatmul.mubr.f32.gmra.mxu0 %v1716
    %v1784 = vpop.f32.mrf.mxu0
    %v1785 = vadd.f32 0.0, %v1784
    %v1786 = vpop.f32.mrf.mxu0
    %v1787 = vadd.f32 0.0, %v1786
    %1788 = vdwg.mxu0
    %v1789 = vadd.f32 %v1785, %v1105
    %v1790 = vadd.f32 %v1787, %v1103
    %v1791 = vadd.f32 %v1787, %v1437
    %v1792 = vmax.f32 %v1789, 0.0
    %1793 = vmatprep.subr.mxu0 0.0
    %1794 = vmatpush1.msra.mxu0 %v1093
    %1795 = vmatprep.subr.mxu0 0.0
    %1796 = vmatpush1.msra.mxu0 %v1092
    %1797 = vmatprep.subr.mxu0 0.0
    %1798 = vmatpush1.msra.mxu0 %v1091
    %1799 = vmatprep.subr.mxu0 0.0
    %1800 = vmatpush1.msra.mxu0 %v1090
    %1801 = vmatprep.subr.mxu0 0.0
    %1802 = vmatpush1.msra.mxu0 %v1089
    %1803 = vmatprep.subr.mxu0 0.0
    %1804 = vmatpush1.msra.mxu0 %v1088
    %1805 = vmatprep.subr.mxu0 0.0
    %1806 = vmatpush1.msra.mxu0 %v1087
    %1807 = vmatprep.subr.mxu0 0.0
    %1808 = vmatpush1.msra.mxu0 %v1086
    %1809 = vmatprep.subr.mxu0 0.0
    %1810 = vmatpush1.msra.mxu0 %v1085
    %1811 = vmatprep.subr.mxu0 0.0
    %1812 = vmatpush1.msra.mxu0 %v1084
    %1813 = vmatprep.subr.mxu0 0.0
    %1814 = vmatpush1.msra.mxu0 %v1083
    %1815 = vmatprep.subr.mxu0 0.0
    %1816 = vmatpush1.msra.mxu0 %v1082
    %1817 = vmatprep.subr.mxu0 0.0
    %1818 = vmatpush1.msra.mxu0 %v1081
    %1819 = vmatprep.subr.mxu0 0.0
    %1820 = vmatpush1.msra.mxu0 %v1080
    %1821 = vmatprep.subr.mxu0 0.0
    %1822 = vmatpush1.msra.mxu0 %v1079
    %1823 = vmatprep.subr.mxu0 0.0
    %1824 = vmatpush1.msra.mxu0 %v1078
    %1825 = vmatprep.subr.mxu0 0.0
    %1826 = vmatpush2.msra.mxu0 0.0
    %1827 = vmatprep.subr.mxu0 0.0
    %1828 = vmatpush2.msra.mxu0 0.0
    %1829 = vmatprep.subr.mxu0 0.0
    %1830 = vmatpush2.msra.mxu0 0.0
    %1831 = vmatprep.subr.mxu0 0.0
    %1832 = vmatpush2.msra.mxu0 0.0
    %1833 = vmatprep.subr.mxu0 0.0
    %1834 = vmatpush2.msra.mxu0 0.0
    %1835 = vmatprep.subr.mxu0 0.0
    %1836 = vmatpush2.msra.mxu0 0.0
    %1837 = vmatprep.subr.mxu0 0.0
    %1838 = vmatpush2.msra.mxu0 0.0
    %1839 = vmatprep.subr.mxu0 0.0
    %1840 = vmatpush2.msra.mxu0 0.0
    %1841 = vmatprep.subr.mxu0 0.0
    %1842 = vmatpush2.msra.mxu0 0.0
    %1843 = vmatprep.subr.mxu0 0.0
    %1844 = vmatpush2.msra.mxu0 0.0
    %1845 = vmatprep.subr.mxu0 0.0
    %1846 = vmatpush2.msra.mxu0 0.0
    %1847 = vmatprep.subr.mxu0 0.0
    %1848 = vmatpush2.msra.mxu0 0.0
    %1849 = vmatprep.subr.mxu0 0.0
    %1850 = vmatpush2.msra.mxu0 0.0
    %1851 = vmatprep.subr.mxu0 0.0
    %1852 = vmatpush2.msra.mxu0 0.0
    %1853 = vmatprep.subr.mxu0 0.0
    %1854 = vmatpush2.msra.mxu0 0.0
    %1855 = vmatprep.subr.mxu0 0.0
    %1856 = vmatpush2.msra.mxu0 0.0
    %1857 = vmatprep.mubr.f32.mxu0 0.0
    %1858 = vmatmul.mubr.f32.gmra.mxu0 %v1792
    %v1859 = vpop.f32.mrf.mxu0
    %v1860 = vadd.f32 %v1094, %v1859
    %v1861 = vpop.f32.mrf.mxu0
    %1862 = vdwg.mxu0
    %v1863 = vadd.f32 %v1860, %v1790
    %v1864 = vxor.u32 %v1863, 2147483648
    %v1865 = vmul.f32 %v1864, 1.442695
    %v1866 = vpow.pop %v1865
    %v1867 = vadd.f32 %v1866, 1.0
    %v1868 = vrcp.pop %v1867
    %v1869 = vmul.f32 1.0, %v1868
    %1871 = vrot.lane.b32.xlu0 %v1790, 64
    %v1872 = vpop.permute.xlu0 %1871
    %v1874 = vmul.f32 %v1869, %v1872
    %1876 = vrot.lane.b32.xlu0 %v1874, 64
    %v1877 = vpop.permute.xlu0 %1876
    %v1879 = vadd.f32 %v1860, %v1877
    %v1880 = vtanh.pop %v1879
    %v1881 = vsub.f32 1.0, %v1869
    %1883 = vrot.lane.b32.xlu0 %v1880, 96
    %v1884 = vpop.permute.xlu0 %1883
    %v1886 = vmul.f32 %v1881, %v1884
    %v1887 = vmul.f32 %v1869, %v1712
    %v1888 = vadd.f32 %v1886, %v1887
    %1890 = vrot.lane.b32.xlu0 %v1888, 96
    %v1891 = vpop.permute.xlu0 %1890
    %v1892 = vsel %vm61, %v1891, 0
    %1894 = vmatprep.subr.mxu0 0.0
    %1895 = vmatpush1.msra.mxu0 0.0
    %1896 = vmatprep.subr.mxu0 0.0
    %1897 = vmatpush1.msra.mxu0 0.0
    %1898 = vmatprep.subr.mxu0 0.0
    %1899 = vmatpush1.msra.mxu0 0.0
    %1900 = vmatprep.subr.mxu0 0.0
    %1901 = vmatpush1.msra.mxu0 0.0
    %1902 = vmatprep.subr.mxu0 0.0
    %1903 = vmatpush1.msra.mxu0 0.0
    %1904 = vmatprep.subr.mxu0 0.0
    %1905 = vmatpush1.msra.mxu0 0.0
    %1906 = vmatprep.subr.mxu0 0.0
    %1907 = vmatpush1.msra.mxu0 0.0
    %1908 = vmatprep.subr.mxu0 0.0
    %1909 = vmatpush1.msra.mxu0 0.0
    %1910 = vmatprep.subr.mxu0 0.0
    %1911 = vmatpush1.msra.mxu0 0.0
    %1912 = vmatprep.subr.mxu0 0.0
    %1913 = vmatpush1.msra.mxu0 0.0
    %1914 = vmatprep.subr.mxu0 0.0
    %1915 = vmatpush1.msra.mxu0 0.0
    %1916 = vmatprep.subr.mxu0 0.0
    %1917 = vmatpush1.msra.mxu0 0.0
    %1918 = vmatprep.subr.mxu0 %v1102
    %1919 = vmatpush1.msra.mxu0 %v1101
    %1920 = vmatprep.subr.mxu0 %v1100
    %1921 = vmatpush1.msra.mxu0 %v1099
    %1922 = vmatprep.subr.mxu0 %v1098
    %1923 = vmatpush1.msra.mxu0 %v1097
    %1924 = vmatprep.subr.mxu0 %v1096
    %1925 = vmatpush1.msra.mxu0 %v1095
    %1926 = vmatprep.subr.mxu0 0.0
    %1927 = vmatpush2.msra.mxu0 0.0
    %1928 = vmatprep.subr.mxu0 0.0
    %1929 = vmatpush2.msra.mxu0 0.0
    %1930 = vmatprep.subr.mxu0 0.0
    %1931 = vmatpush2.msra.mxu0 0.0
    %1932 = vmatprep.subr.mxu0 0.0
    %1933 = vmatpush2.msra.mxu0 0.0
    %1934 = vmatprep.subr.mxu0 0.0
    %1935 = vmatpush2.msra.mxu0 0.0
    %1936 = vmatprep.subr.mxu0 0.0
    %1937 = vmatpush2.msra.mxu0 0.0
    %1938 = vmatprep.subr.mxu0 0.0
    %1939 = vmatpush2.msra.mxu0 0.0
    %1940 = vmatprep.subr.mxu0 0.0
    %1941 = vmatpush2.msra.mxu0 0.0
    %1942 = vmatprep.subr.mxu0 0.0
    %1943 = vmatpush2.msra.mxu0 0.0
    %1944 = vmatprep.subr.mxu0 0.0
    %1945 = vmatpush2.msra.mxu0 0.0
    %1946 = vmatprep.subr.mxu0 0.0
    %1947 = vmatpush2.msra.mxu0 0.0
    %1948 = vmatprep.subr.mxu0 0.0
    %1949 = vmatpush2.msra.mxu0 0.0
    %1950 = vmatprep.subr.mxu0 0.0
    %1951 = vmatpush2.msra.mxu0 0.0
    %1952 = vmatprep.subr.mxu0 0.0
    %1953 = vmatpush2.msra.mxu0 0.0
    %1954 = vmatprep.subr.mxu0 0.0
    %1955 = vmatpush2.msra.mxu0 0.0
    %1956 = vmatprep.subr.mxu0 0.0
    %1957 = vmatpush2.msra.mxu0 0.0
    %1958 = vmatprep.mubr.f32.mxu0 0.0
    %1959 = vmatmul.mubr.f32.gmra.mxu0 %v1892
    %v1960 = vpop.f32.mrf.mxu0
    %v1961 = vpop.f32.mrf.mxu0
    %v1962 = vadd.f32 0.0, %v1961
    %1963 = vdwg.mxu0
    %v1964 = vadd.f32 %v1962, %v1437
    %1969 = vrot.lane.b32.xlu0 %v1439, 32
    %v1970 = vpop.permute.xlu0 %1969
    %1971 = vrot.lane.b32.xlu0 %v1615, 32
    %v1972 = vpop.permute.xlu0 %1971
    %1973 = vrot.lane.b32.xlu0 %v1791, 32
    %v1974 = vpop.permute.xlu0 %1973
    %1975 = vrot.lane.b32.xlu0 %v1964, 32
    %v1976 = vpop.permute.xlu0 %1975
    %vm1981 = vcmask 58368
    %1982 = vst.msk [vmem:[#allocation8] sm:$0x3] %vm1981, %v1970
    %1983 = vst.msk [vmem:[#allocation8 + $0x2] sm:$0x3] %vm1981, %v1972
    %1984 = vst.msk [vmem:[#allocation8 + $0x4] sm:$0x3] %vm1981, %v1974
    %1985 = vst.msk [vmem:[#allocation8 + $0x6] sm:$0x3] %vm1981, %v1976
    // Predicated region
    $region26: #{tpu_custom_call.1} parent=1 // pred_check
      _
    $region27: #{tpu_custom_call.1} parent=1 // pred_check_branch
      %1987 = sbr.rel (0) target = $region29
    $region28: #{tpu_custom_call.1} parent=1 // pred_region
      %s1989 = ssub.s32 128, 128
      %1990 = vsyncadd [#allocation4], %s1989
      %s1991 = sshll.u32 [#allocation8], 4
      %s1992 = int_to_ptr.vmem [resolvable:$true] %s1991
      %1997 = dma.vmem_to_hbm [thread:$0]  %s1992, 128, %s3, [#allocation4], 32, 32, 2
    $region29: #{tpu_custom_call.1} parent=1 // pred_fallthru
      _
    // Predicated region
    $region30: #{tpu_custom_call.1} parent=1 // pred_check
      _
    $region31: #{tpu_custom_call.1} parent=1 // pred_check_branch
      %1999 = sbr.rel (0) target = $region33
    $region32: #{tpu_custom_call.1} parent=1 // pred_region
      %2000 = dma.done [#allocation4], 128
    $region33: #{tpu_custom_call.1} parent=1 // pred_fallthru
      _
    %2001 = vsyncpa [#allocation3], 1
    %2002 = vsyncpa [#allocation6], 1
    %2003 = vsyncpa [#allocation4], 1

</llo_original>
